<compile_context>
chip_gen: v7x
topology: tpu7x:2x2x1
jax: 0.10.0
libtpu: 0.0.40
codegen_flags: <defaults>
</compile_context>

<pallas_src>
import jax
import jax.numpy as jnp
from jax.experimental import pallas as pl
from jax.experimental.pallas import tpu as pltpu


# ----------------------- generic projection kernel ------------------------- #
def _matmul_bias_kernel(x_ref, w_ref, b_ref, o_ref):
    o_ref[...] = (jnp.dot(x_ref[...], w_ref[...],
                          preferred_element_type=jnp.float32) + b_ref[...])


def matmul_bias(x, w, b):
    """out = x @ w + b, tiled over M (and N when large) for megacore sharding."""
    M, K = x.shape
    N = w.shape[1]
    tm = M
    for cand in (512, 256, 128):
        if M > cand and M % cand == 0:
            tm = cand
            break
    tn = N
    if N > 2048:                       # keep weight tiles VMEM-friendly (v7x: 64 MiB)
        for cand in (2048, 1024, 512, 256, 128):
            if N % cand == 0:
                tn = cand
                break
    return pl.pallas_call(
        _matmul_bias_kernel,
        out_shape=jax.ShapeDtypeStruct((M, N), jnp.float32),
        grid_spec=pltpu.PrefetchScalarGridSpec(
            num_scalar_prefetch=0,
            grid=(M // tm, N // tn),
            in_specs=[
                pl.BlockSpec((tm, K), lambda i, j: (i, 0)),
                pl.BlockSpec((K, tn), lambda i, j: (0, j)),
                pl.BlockSpec((1, tn), lambda i, j: (0, j)),
            ],
            out_specs=pl.BlockSpec((tm, tn), lambda i, j: (i, j)),
        ),
        compiler_params=pltpu.CompilerParams(
            dimension_semantics=("parallel", "parallel")),
    )(x, w, b)


# ----------------------------- encoder kernel ------------------------------ #
def _encoder_gru_kernel(xg_ref, whh_ref, bhh_ref, out_ref, hfin_ref):
    T, B, H3 = xg_ref.shape
    H = H3 // 3
    whh = whh_ref[...]                       # (H, 3H)
    bhh = bhh_ref[...]                       # (1, 3H)

    def step(t, h):
        gi = xg_ref[t]                       # (B, 3H): x_t @ W_ih + b_ih (hoisted)
        gh = jnp.dot(h, whh, preferred_element_type=jnp.float32) + bhh
        r = jax.nn.sigmoid(gi[:, :H] + gh[:, :H])
        z = jax.nn.sigmoid(gi[:, H:2 * H] + gh[:, H:2 * H])
        n = jnp.tanh(gi[:, 2 * H:] + r * gh[:, 2 * H:])
        h_new = (1.0 - z) * n + z * h
        out_ref[t] = h_new
        return h_new

    h_last = jax.lax.fori_loop(0, T, step, jnp.zeros((B, H), jnp.float32))
    hfin_ref[...] = h_last                   # written once, after the loop


def encoder_recurrent(xg, whh, bhh):
    T, B, H3 = xg.shape
    H = H3 // 3
    return pl.pallas_call(
        _encoder_gru_kernel,
        out_shape=(jax.ShapeDtypeStruct((T, B, H), jnp.float32),
                   jax.ShapeDtypeStruct((B, H), jnp.float32)),
        grid_spec=pltpu.PrefetchScalarGridSpec(
            num_scalar_prefetch=0,
            grid=(1,),
            in_specs=[
                pl.BlockSpec((T, B, H3), lambda i: (0, 0, 0)),   # precomputed gates
                pl.BlockSpec((H, H3), lambda i: (0, 0)),         # W_hh (r|z|n)
                pl.BlockSpec((1, H3), lambda i: (0, 0)),         # b_hh
            ],
            out_specs=[
                pl.BlockSpec((T, B, H), lambda i: (0, 0, 0)),    # all hidden states
                pl.BlockSpec((B, H), lambda i: (0, 0)),          # final hidden
            ],
        ),
        compiler_params=pltpu.CompilerParams(dimension_semantics=("arbitrary",)),
    )(xg, whh, bhh)


# ----------------------------- decoder kernel ------------------------------ #
def _decoder_gru_kernel(yg_ref, enc_ref, keys_ref, h0_ref,
                        wq_ref, wv_ref, wihc_ref, whh_ref, bhh_ref,
                        hall_ref, hfin_ref):
    T, B, H3 = yg_ref.shape
    H = H3 // 3
    enc = enc_ref[...]                        # (B, Te, H)   attention values
    keys = keys_ref[...]                      # (B, Te, A)   precomputed enc @ W_k
    wq = wq_ref[...]                          # (H, A)
    wv = wv_ref[...]                          # (1, A)
    wihc = wihc_ref[...]                      # (H, 3H)      context part of W_ih
    whh = whh_ref[...]                        # (H, 3H)
    bhh = bhh_ref[...]                        # (1, 3H)

    def step(t, h):
        # --- Bahdanau additive attention (enc_valid_lens=None -> plain softmax)
        q = jnp.dot(h, wq, preferred_element_type=jnp.float32)        # (B, A)
        feat = jnp.tanh(q[:, None, :] + keys)                         # (B, Te, A)
        scores = jnp.sum(feat * wv[None, :, :], axis=-1)              # (B, Te)
        scores = scores - jnp.max(scores, axis=-1, keepdims=True)
        e = jnp.exp(scores)
        attn = e * pl.reciprocal(jnp.sum(e, axis=-1, keepdims=True), approx=True)
        # At production sizes route this reduction through the MXU
        # (jnp.einsum('bqt,bth->bqh', ...)); at Te=8 the VPU path is free.
        context = jnp.sum(attn[:, :, None] * enc, axis=1)             # (B, H)

        # --- GRU step on concat(context, y_t): split-weight formulation.
        gi = yg_ref[t] + jnp.dot(context, wihc,
                                 preferred_element_type=jnp.float32)  # (B, 3H)
        gh = jnp.dot(h, whh, preferred_element_type=jnp.float32) + bhh
        r = jax.nn.sigmoid(gi[:, :H] + gh[:, :H])
        z = jax.nn.sigmoid(gi[:, H:2 * H] + gh[:, H:2 * H])
        n = jnp.tanh(gi[:, 2 * H:] + r * gh[:, 2 * H:])
        h_new = (1.0 - z) * n + z * h
        hall_ref[t] = h_new
        return h_new

    h_last = jax.lax.fori_loop(0, T, step, h0_ref[...])
    hfin_ref[...] = h_last


def decoder_recurrent(yg, enc_b, keys, h0, p):
    T, B, H3 = yg.shape
    H = H3 // 3
    Te = enc_b.shape[1]
    A = keys.shape[2]
    return pl.pallas_call(
        _decoder_gru_kernel,
        out_shape=(jax.ShapeDtypeStruct((T, B, H), jnp.float32),
                   jax.ShapeDtypeStruct((B, H), jnp.float32)),
        grid_spec=pltpu.PrefetchScalarGridSpec(
            num_scalar_prefetch=0,
            grid=(1,),
            in_specs=[
                pl.BlockSpec((T, B, H3), lambda i: (0, 0, 0)),   # y gates (hoisted)
                pl.BlockSpec((B, Te, H), lambda i: (0, 0, 0)),   # enc values
                pl.BlockSpec((B, Te, A), lambda i: (0, 0, 0)),   # keys (hoisted)
                pl.BlockSpec((B, H), lambda i: (0, 0)),          # init hidden
                pl.BlockSpec((H, A), lambda i: (0, 0)),          # W_q
                pl.BlockSpec((1, A), lambda i: (0, 0)),          # w_v
                pl.BlockSpec((H, H3), lambda i: (0, 0)),         # W_ih (context)
                pl.BlockSpec((H, H3), lambda i: (0, 0)),         # W_hh
                pl.BlockSpec((1, H3), lambda i: (0, 0)),         # b_hh
            ],
            out_specs=[
                pl.BlockSpec((T, B, H), lambda i: (0, 0, 0)),    # all hidden states
                pl.BlockSpec((B, H), lambda i: (0, 0)),          # final hidden
            ],
        ),
        compiler_params=pltpu.CompilerParams(dimension_semantics=("arbitrary",)),
    )(yg, enc_b, keys, h0, p["wq"], p["wv"], p["wih_c"], p["whh"], p["bhh"])


# ------------------------- EncoderDecoder.forward -------------------------- #
def encoder_decoder_forward(params, X, Y, state=None):
    enc_p, dec_p = params["enc"], params["dec"]
    B, T_src = X.shape
    _, T_tgt = Y.shape
    E = enc_p["emb"].shape[1]
    H = enc_p["whh"].shape[0]
    A = dec_p["wq"].shape[1]
    V = dec_p["wd"].shape[1]

    # ---- encoder(X): hoisted input projection + in-kernel time recurrence ----
    x_emb = jnp.take(enc_p["emb"], X, axis=0)                       # (B, T, E) glue
    x_emb_t = jnp.transpose(x_emb, (1, 0, 2)).reshape(T_src * B, E)
    xg = matmul_bias(x_emb_t, enc_p["wih"], enc_p["bih"]).reshape(T_src, B, 3 * H)
    enc_out_tbh, h_fin = encoder_recurrent(xg, enc_p["whh"], enc_p["bhh"])
    hidden_state = h_fin[None]                                      # (1, B, H)

    # ---- decoder.init_state((enc_outputs, hidden_state), enc_valid_lens=None)
    if state is None:
        state = (jnp.transpose(enc_out_tbh, (1, 0, 2)), hidden_state, None)
    enc_b, hid, enc_valid_lens = state                              # (B, Te, H)

    # ---- decoder(Y, state): keys & embed gates hoisted, projection batched ---
    Te = enc_b.shape[1]
    keys = matmul_bias(enc_b.reshape(B * Te, H), dec_p["wk"],
                       jnp.zeros((1, A), jnp.float32)).reshape(B, Te, A)
    y_emb = jnp.take(dec_p["emb"], Y, axis=0)
    y_emb_t = jnp.transpose(y_emb, (1, 0, 2)).reshape(T_tgt * B, E)
    yg = matmul_bias(y_emb_t, dec_p["wih_e"], dec_p["bih"]).reshape(T_tgt, B, 3 * H)

    h_all_tbh, h_dec_fin = decoder_recurrent(yg, enc_b, keys, hid[0], dec_p)

    # batched output projection, logits come out directly in (B, T_dec, V)
    h_all_bt = jnp.transpose(h_all_tbh, (1, 0, 2)).reshape(B * T_tgt, H)
    output = matmul_bias(h_all_bt, dec_p["wd"], dec_p["bd"]).reshape(B, T_tgt, V)

    new_state = (enc_b, h_dec_fin[None], enc_valid_lens)
    return output, new_state


# ------------------------------ parameter init ----------------------------- #
def init_params(key, vocab_src, vocab_tgt, E, H, A):
    ks = jax.random.split(key, 16)
    s = 0.1
    f = jnp.float32
    enc = dict(
        emb=jax.random.normal(ks[0], (vocab_src, E), f) * s,
        wih=jax.random.normal(ks[1], (E, 3 * H), f) * s,     # gates stacked (r|z|n)
        whh=jax.random.normal(ks[2], (H, 3 * H), f) * s,
        bih=jax.random.normal(ks[3], (1, 3 * H), f) * s,
        bhh=jax.random.normal(ks[4], (1, 3 * H), f) * s,
    )
    dec = dict(
        emb=jax.random.normal(ks[5], (vocab_tgt, E), f) * s,
        wq=jax.random.normal(ks[6], (H, A), f) * s,
        wk=jax.random.normal(ks[7], (H, A), f) * s,
        wv=jax.random.normal(ks[8], (1, A), f) * s,
        wih_c=jax.random.normal(ks[9], (H, 3 * H), f) * s,    # context rows of W_ih
        wih_e=jax.random.normal(ks[10], (E, 3 * H), f) * s,   # embedding rows of W_ih
        whh=jax.random.normal(ks[11], (H, 3 * H), f) * s,
        bih=jax.random.normal(ks[12], (1, 3 * H), f) * s,
        bhh=jax.random.normal(ks[13], (1, 3 * H), f) * s,
        wd=jax.random.normal(ks[14], (H, vocab_tgt), f) * s,
        bd=jax.random.normal(ks[15], (1, vocab_tgt), f) * s,
    )
    return {"enc": enc, "dec": dec}


# --------------------------- pure-JAX reference ----------------------------- #
def _reference_forward(params, X, Y):
    enc_p, dec_p = params["enc"], params["dec"]
    H = enc_p["whh"].shape[0]

    def gru_step(h, gi, whh, bhh):
        gh = h @ whh + bhh
        r = jax.nn.sigmoid(gi[:, :H] + gh[:, :H])
        z = jax.nn.sigmoid(gi[:, H:2 * H] + gh[:, H:2 * H])
        n = jnp.tanh(gi[:, 2 * H:] + r * gh[:, 2 * H:])
        return (1.0 - z) * n + z * h

    x_emb = jnp.take(enc_p["emb"], X, axis=0)
    B, T = x_emb.shape[0], x_emb.shape[1]
    h = jnp.zeros((B, H), jnp.float32)
    enc_outs = []
    for t in range(T):
        gi = x_emb[:, t, :] @ enc_p["wih"] + enc_p["bih"]
        h = gru_step(h, gi, enc_p["whh"], enc_p["bhh"])
        enc_outs.append(h)
    enc_b = jnp.stack(enc_outs, axis=1)                           # (B, T, H)

    y_emb = jnp.take(dec_p["emb"], Y, axis=0)
    Td = y_emb.shape[1]
    keys = enc_b @ dec_p["wk"]
    hd = h
    logits = []
    for t in range(Td):
        q = hd @ dec_p["wq"]
        feat = jnp.tanh(q[:, None, :] + keys)
        scores = jnp.sum(feat * dec_p["wv"][None, :, :], axis=-1)
        attn = jax.nn.softmax(scores, axis=-1)
        context = jnp.einsum("bt,bth->bh", attn, enc_b)
        gi = (y_emb[:, t, :] @ dec_p["wih_e"] + dec_p["bih"]
              + context @ dec_p["wih_c"])
        hd = gru_step(hd, gi, dec_p["whh"], dec_p["bhh"])
        logits.append(hd @ dec_p["wd"] + dec_p["bd"])
    return jnp.stack(logits, axis=1), enc_b, hd


if __name__ == "__main__":
    # Small but lane/sublane-aligned shapes (B mult of 8; H, A, V mult of 128).
    B, T_src, T_tgt = 8, 8, 8
    vocab_src, vocab_tgt, E, H, A = 128, 128, 32, 128, 128

    key = jax.random.PRNGKey(0)
    pkey, xkey, ykey = jax.random.split(key, 3)
    params = init_params(pkey, vocab_src, vocab_tgt, E, H, A)
    X = jax.random.randint(xkey, (B, T_src), 0, vocab_src, dtype=jnp.int32)
    Y = jax.random.randint(ykey, (B, T_tgt), 0, vocab_tgt, dtype=jnp.int32)

    fwd = jax.jit(encoder_decoder_forward)
    output, state = fwd(params, X, Y)
    output = jax.block_until_ready(output)
    jax.block_until_ready(state[1])

    assert output.shape == (B, T_tgt, vocab_tgt)
    assert state[0].shape == (B, T_src, H)
    assert state[1].shape == (1, B, H)
    assert bool(jnp.all(jnp.isfinite(output)))

    # Validate against the pure-JAX reference (approx reciprocal in the kernel
    # softmax introduces ~1e-4 relative error; tolerance is generous).
    ref_out, ref_enc, ref_hfin = _reference_forward(params, X, Y)
    assert bool(jnp.allclose(output, ref_out, rtol=1e-2, atol=1e-2))
    assert bool(jnp.allclose(state[0], ref_enc, rtol=1e-2, atol=1e-2))
    assert bool(jnp.allclose(state[1][0], ref_hfin, rtol=1e-2, atol=1e-2))

    print("KERNEL_OK")
</pallas_src>

<mosaic_0001>
module attributes {stable_mosaic.version = 11 : i64} {
  func.func @_matmul_bias_kernel(%arg0: i32, %arg1: i32, %arg2: memref<64x128xf32, #tpu.memory_space<vmem>>, %arg3: memref<128x128xf32, #tpu.memory_space<vmem>>, %arg4: memref<1x128xf32, #tpu.memory_space<vmem>>, %arg5: memref<64x128xf32, #tpu.memory_space<vmem>>) attributes {dimension_semantics = [#tpu.dimension_semantics<parallel>, #tpu.dimension_semantics<parallel>], iteration_bounds = array<i64: 1, 1>, scalar_prefetch = 0 : i64, scratch_operands = 0 : i64, tpu.core_type = #tpu.core_type<tc>, window_params = [{transform_indices = @transform_0, window_bounds = array<i64: 64, 128>}, {transform_indices = @transform_1, window_bounds = array<i64: 128, 128>}, {transform_indices = @transform_2, window_bounds = array<i64: 1, 128>}, {transform_indices = @transform_3, window_bounds = array<i64: 64, 128>}]} {
    %c0 = arith.constant 0 : index
    %c0_0 = arith.constant 0 : index
    %0 = vector.load %arg2[%c0, %c0_0] : memref<64x128xf32, #tpu.memory_space<vmem>>, vector<64x128xf32>
    %c0_1 = arith.constant 0 : index
    %c0_2 = arith.constant 0 : index
    %1 = vector.load %arg3[%c0_1, %c0_2] : memref<128x128xf32, #tpu.memory_space<vmem>>, vector<128x128xf32>
    %cst = arith.constant dense<0.000000e+00> : vector<64x128xf32>
    %2 = tpu.matmul %0, %1, %cst {dimension_numbers = #tpu.dot_dimension_numbers<[1], [0], [0], [1], [0, 0, 1, 1], [], []>} : vector<64x128xf32>, vector<128x128xf32>, vector<64x128xf32> -> vector<64x128xf32>
    %c0_3 = arith.constant 0 : index
    %c0_4 = arith.constant 0 : index
    %3 = vector.load %arg4[%c0_3, %c0_4] : memref<1x128xf32, #tpu.memory_space<vmem>>, vector<1x128xf32>
    %4 = vector.broadcast %3 : vector<1x128xf32> to vector<64x128xf32>
    %5 = arith.addf %2, %4 : vector<64x128xf32>
    %c0_5 = arith.constant 0 : index
    %c0_6 = arith.constant 0 : index
    %6 = vector.load %arg5[%c0_5, %c0_6] : memref<64x128xf32, #tpu.memory_space<vmem>>, vector<64x128xf32>
    tpu.vector_store %arg5[%c0_5, %c0_6], %5 {strides = array<i32>} : memref<64x128xf32, #tpu.memory_space<vmem>>, vector<64x128xf32>,
    return
  }
  func.func @transform_0(%arg0: i32, %arg1: i32) -> (i32, i32) {
    %c0_i32 = arith.constant 0 : i32
    %c0_i32_0 = arith.constant 0 : i32
    return %arg0, %c0_i32 : i32, i32
  }
  func.func @transform_1(%arg0: i32, %arg1: i32) -> (i32, i32) {
    %c0_i32 = arith.constant 0 : i32
    %c0_i32_0 = arith.constant 0 : i32
    return %c0_i32, %arg1 : i32, i32
  }
  func.func @transform_2(%arg0: i32, %arg1: i32) -> (i32, i32) {
    %c0_i32 = arith.constant 0 : i32
    %c0_i32_0 = arith.constant 0 : i32
    return %c0_i32, %arg1 : i32, i32
  }
  func.func @transform_3(%arg0: i32, %arg1: i32) -> (i32, i32) {
    %c0_i32 = arith.constant 0 : i32
    return %arg0, %arg1 : i32, i32
  }
}

module attributes {stable_mosaic.version = 11 : i64} {
  func.func @_matmul_bias_kernel(%arg0: i32, %arg1: i32, %arg2: memref<64x32xf32, #tpu.memory_space<vmem>>, %arg3: memref<32x384xf32, #tpu.memory_space<vmem>>, %arg4: memref<1x384xf32, #tpu.memory_space<vmem>>, %arg5: memref<64x384xf32, #tpu.memory_space<vmem>>) attributes {dimension_semantics = [#tpu.dimension_semantics<parallel>, #tpu.dimension_semantics<parallel>], iteration_bounds = array<i64: 1, 1>, scalar_prefetch = 0 : i64, scratch_operands = 0 : i64, tpu.core_type = #tpu.core_type<tc>, window_params = [{transform_indices = @transform_0, window_bounds = array<i64: 64, 32>}, {transform_indices = @transform_1, window_bounds = array<i64: 32, 384>}, {transform_indices = @transform_2, window_bounds = array<i64: 1, 384>}, {transform_indices = @transform_3, window_bounds = array<i64: 64, 384>}]} {
    %c0 = arith.constant 0 : index
    %c0_0 = arith.constant 0 : index
    %0 = vector.load %arg2[%c0, %c0_0] : memref<64x32xf32, #tpu.memory_space<vmem>>, vector<64x32xf32>
    %c0_1 = arith.constant 0 : index
    %c0_2 = arith.constant 0 : index
    %1 = vector.load %arg3[%c0_1, %c0_2] : memref<32x384xf32, #tpu.memory_space<vmem>>, vector<32x384xf32>
    %cst = arith.constant dense<0.000000e+00> : vector<64x384xf32>
    %2 = tpu.matmul %0, %1, %cst {dimension_numbers = #tpu.dot_dimension_numbers<[1], [0], [0], [1], [0, 0, 1, 1], [], []>} : vector<64x32xf32>, vector<32x384xf32>, vector<64x384xf32> -> vector<64x384xf32>
    %c0_3 = arith.constant 0 : index
    %c0_4 = arith.constant 0 : index
    %3 = vector.load %arg4[%c0_3, %c0_4] : memref<1x384xf32, #tpu.memory_space<vmem>>, vector<1x384xf32>
    %4 = vector.broadcast %3 : vector<1x384xf32> to vector<64x384xf32>
    %5 = arith.addf %2, %4 : vector<64x384xf32>
    %c0_5 = arith.constant 0 : index
    %c0_6 = arith.constant 0 : index
    %6 = vector.load %arg5[%c0_5, %c0_6] : memref<64x384xf32, #tpu.memory_space<vmem>>, vector<64x384xf32>
    tpu.vector_store %arg5[%c0_5, %c0_6], %5 {strides = array<i32>} : memref<64x384xf32, #tpu.memory_space<vmem>>, vector<64x384xf32>,
    return
  }
  func.func @transform_0(%arg0: i32, %arg1: i32) -> (i32, i32) {
    %c0_i32 = arith.constant 0 : i32
    %c0_i32_0 = arith.constant 0 : i32
    return %arg0, %c0_i32 : i32, i32
  }
  func.func @transform_1(%arg0: i32, %arg1: i32) -> (i32, i32) {
    %c0_i32 = arith.constant 0 : i32
    %c0_i32_0 = arith.constant 0 : i32
    return %c0_i32, %arg1 : i32, i32
  }
  func.func @transform_2(%arg0: i32, %arg1: i32) -> (i32, i32) {
    %c0_i32 = arith.constant 0 : i32
    %c0_i32_0 = arith.constant 0 : i32
    return %c0_i32, %arg1 : i32, i32
  }
  func.func @transform_3(%arg0: i32, %arg1: i32) -> (i32, i32) {
    %c0_i32 = arith.constant 0 : i32
    return %arg0, %arg1 : i32, i32
  }
}

module attributes {stable_mosaic.version = 11 : i64} {
  func.func @_encoder_gru_kernel(%arg0: i32, %arg1: memref<8x8x384xf32, #tpu.memory_space<vmem>>, %arg2: memref<128x384xf32, #tpu.memory_space<vmem>>, %arg3: memref<1x384xf32, #tpu.memory_space<vmem>>, %arg4: memref<8x8x128xf32, #tpu.memory_space<vmem>>, %arg5: memref<8x128xf32, #tpu.memory_space<vmem>>) attributes {dimension_semantics = [#tpu.dimension_semantics<arbitrary>], iteration_bounds = array<i64: 1>, scalar_prefetch = 0 : i64, scratch_operands = 0 : i64, tpu.core_type = #tpu.core_type<tc>, window_params = [{pipeline_mode = #tpu.pipeline_mode<synchronous>, transform_indices = @transform_0, window_bounds = array<i64: 8, 8, 384>}, {pipeline_mode = #tpu.pipeline_mode<synchronous>, transform_indices = @transform_1, window_bounds = array<i64: 128, 384>}, {pipeline_mode = #tpu.pipeline_mode<synchronous>, transform_indices = @transform_2, window_bounds = array<i64: 1, 384>}, {pipeline_mode = #tpu.pipeline_mode<synchronous>, transform_indices = @transform_3, window_bounds = array<i64: 8, 8, 128>}, {pipeline_mode = #tpu.pipeline_mode<synchronous>, transform_indices = @transform_4, window_bounds = array<i64: 8, 128>}]} {
    %c0 = arith.constant 0 : index
    %c0_0 = arith.constant 0 : index
    %0 = vector.load %arg2[%c0, %c0_0] : memref<128x384xf32, #tpu.memory_space<vmem>>, vector<128x384xf32>
    %c0_1 = arith.constant 0 : index
    %c0_2 = arith.constant 0 : index
    %1 = vector.load %arg3[%c0_1, %c0_2] : memref<1x384xf32, #tpu.memory_space<vmem>>, vector<1x384xf32>
    %cst = arith.constant 0.000000e+00 : f32
    %2 = vector.broadcast %cst : f32 to vector<8x128xf32>
    %c0_i32 = arith.constant 0 : i32
    %c8_i32 = arith.constant 8 : i32
    %3 = arith.addi %c0_i32, %c8_i32 : i32
    %c1_i32 = arith.constant 1 : i32
    %4 = scf.for %arg6 = %c0_i32 to %3 step %c1_i32 iter_args(%arg7 = %2) -> (vector<8x128xf32>)  : i32 {
      %6 = arith.index_cast %arg6 : i32 to index
      %c0_6 = arith.constant 0 : index
      %c0_7 = arith.constant 0 : index
      %7 = vector.load %arg1[%6, %c0_6, %c0_7] : memref<8x8x384xf32, #tpu.memory_space<vmem>>, vector<1x8x384xf32>
      %8 = vector.shape_cast %7 : vector<1x8x384xf32> to vector<8x384xf32>
      %cst_8 = arith.constant dense<0.000000e+00> : vector<8x384xf32>
      %9 = tpu.matmul %arg7, %0, %cst_8 {dimension_numbers = #tpu.dot_dimension_numbers<[1], [0], [0], [1], [0, 0, 1, 1], [], []>} : vector<8x128xf32>, vector<128x384xf32>, vector<8x384xf32> -> vector<8x384xf32>
      %10 = vector.broadcast %1 : vector<1x384xf32> to vector<8x384xf32>
      %11 = arith.addf %9, %10 : vector<8x384xf32>
      %12 = vector.extract_strided_slice %8 {offsets = [0, 0], sizes = [8, 128], strides = [1, 1]} : vector<8x384xf32> to vector<8x128xf32>
      %13 = vector.extract_strided_slice %11 {offsets = [0, 0], sizes = [8, 128], strides = [1, 1]} : vector<8x384xf32> to vector<8x128xf32>
      %14 = arith.addf %12, %13 : vector<8x128xf32>
      %15 = arith.negf %14 : vector<8x128xf32>
      %16 = math.exp %15 : vector<8x128xf32>
      %cst_9 = arith.constant 1.000000e+00 : f32
      %17 = vector.broadcast %cst_9 : f32 to vector<8x128xf32>
      %18 = arith.addf %17, %16 : vector<8x128xf32>
      %19 = arith.divf %17, %18 : vector<8x128xf32>
      %20 = vector.extract_strided_slice %8 {offsets = [0, 128], sizes = [8, 128], strides = [1, 1]} : vector<8x384xf32> to vector<8x128xf32>
      %21 = vector.extract_strided_slice %11 {offsets = [0, 128], sizes = [8, 128], strides = [1, 1]} : vector<8x384xf32> to vector<8x128xf32>
      %22 = arith.addf %20, %21 : vector<8x128xf32>
      %23 = arith.negf %22 : vector<8x128xf32>
      %24 = math.exp %23 : vector<8x128xf32>
      %cst_10 = arith.constant 1.000000e+00 : f32
      %25 = vector.broadcast %cst_10 : f32 to vector<8x128xf32>
      %26 = arith.addf %25, %24 : vector<8x128xf32>
      %27 = arith.divf %25, %26 : vector<8x128xf32>
      %28 = vector.extract_strided_slice %8 {offsets = [0, 256], sizes = [8, 128], strides = [1, 1]} : vector<8x384xf32> to vector<8x128xf32>
      %29 = vector.extract_strided_slice %11 {offsets = [0, 256], sizes = [8, 128], strides = [1, 1]} : vector<8x384xf32> to vector<8x128xf32>
      %30 = arith.mulf %19, %29 : vector<8x128xf32>
      %31 = arith.addf %28, %30 : vector<8x128xf32>
      %32 = math.tanh %31 : vector<8x128xf32>
      %cst_11 = arith.constant 1.000000e+00 : f32
      %33 = vector.broadcast %cst_11 : f32 to vector<8x128xf32>
      %34 = arith.subf %33, %27 : vector<8x128xf32>
      %35 = arith.mulf %34, %32 : vector<8x128xf32>
      %36 = arith.mulf %27, %arg7 : vector<8x128xf32>
      %37 = arith.addf %35, %36 : vector<8x128xf32>
      %38 = arith.index_cast %arg6 : i32 to index
      %c0_12 = arith.constant 0 : index
      %c0_13 = arith.constant 0 : index
      %39 = vector.load %arg4[%38, %c0_12, %c0_13] : memref<8x8x128xf32, #tpu.memory_space<vmem>>, vector<1x8x128xf32>
      %40 = vector.shape_cast %39 : vector<1x8x128xf32> to vector<8x128xf32>
      %41 = vector.shape_cast %37 : vector<8x128xf32> to vector<1x8x128xf32>
      tpu.vector_store %arg4[%38, %c0_12, %c0_13], %41 {strides = array<i32>} : memref<8x8x128xf32, #tpu.memory_space<vmem>>, vector<1x8x128xf32>,
      scf.yield %37 : vector<8x128xf32>
    }
    %c8_i32_3 = arith.constant 8 : i32
    %c0_4 = arith.constant 0 : index
    %c0_5 = arith.constant 0 : index
    %5 = vector.load %arg5[%c0_4, %c0_5] : memref<8x128xf32, #tpu.memory_space<vmem>>, vector<8x128xf32>
    tpu.vector_store %arg5[%c0_4, %c0_5], %4 {strides = array<i32>} : memref<8x128xf32, #tpu.memory_space<vmem>>, vector<8x128xf32>,
    return
  }
  func.func @transform_0(%arg0: i32) -> (i32, i32, i32) {
    %c0_i32 = arith.constant 0 : i32
    %c0_i32_0 = arith.constant 0 : i32
    %c0_i32_1 = arith.constant 0 : i32
    %c0_i32_2 = arith.constant 0 : i32
    return %c0_i32, %c0_i32_0, %c0_i32_1 : i32, i32, i32
  }
  func.func @transform_1(%arg0: i32) -> (i32, i32) {
    %c0_i32 = arith.constant 0 : i32
    %c0_i32_0 = arith.constant 0 : i32
    %c0_i32_1 = arith.constant 0 : i32
    return %c0_i32, %c0_i32_0 : i32, i32
  }
  func.func @transform_2(%arg0: i32) -> (i32, i32) {
    %c0_i32 = arith.constant 0 : i32
    %c0_i32_0 = arith.constant 0 : i32
    %c0_i32_1 = arith.constant 0 : i32
    return %c0_i32, %c0_i32_0 : i32, i32
  }
  func.func @transform_3(%arg0: i32) -> (i32, i32, i32) {
    %c0_i32 = arith.constant 0 : i32
    %c0_i32_0 = arith.constant 0 : i32
    %c0_i32_1 = arith.constant 0 : i32
    %c0_i32_2 = arith.constant 0 : i32
    return %c0_i32, %c0_i32_0, %c0_i32_1 : i32, i32, i32
  }
  func.func @transform_4(%arg0: i32) -> (i32, i32) {
    %c0_i32 = arith.constant 0 : i32
    %c0_i32_0 = arith.constant 0 : i32
    %c0_i32_1 = arith.constant 0 : i32
    return %c0_i32, %c0_i32_0 : i32, i32
  }
}

module attributes {stable_mosaic.version = 11 : i64} {
  func.func @_decoder_gru_kernel(%arg0: i32, %arg1: memref<8x8x384xf32, #tpu.memory_space<vmem>>, %arg2: memref<8x8x128xf32, #tpu.memory_space<vmem>>, %arg3: memref<8x8x128xf32, #tpu.memory_space<vmem>>, %arg4: memref<8x128xf32, #tpu.memory_space<vmem>>, %arg5: memref<128x128xf32, #tpu.memory_space<vmem>>, %arg6: memref<1x128xf32, #tpu.memory_space<vmem>>, %arg7: memref<128x384xf32, #tpu.memory_space<vmem>>, %arg8: memref<128x384xf32, #tpu.memory_space<vmem>>, %arg9: memref<1x384xf32, #tpu.memory_space<vmem>>, %arg10: memref<8x8x128xf32, #tpu.memory_space<vmem>>, %arg11: memref<8x128xf32, #tpu.memory_space<vmem>>) attributes {dimension_semantics = [#tpu.dimension_semantics<arbitrary>], iteration_bounds = array<i64: 1>, scalar_prefetch = 0 : i64, scratch_operands = 0 : i64, tpu.core_type = #tpu.core_type<tc>, window_params = [{pipeline_mode = #tpu.pipeline_mode<synchronous>, transform_indices = @transform_0, window_bounds = array<i64: 8, 8, 384>}, {pipeline_mode = #tpu.pipeline_mode<synchronous>, transform_indices = @transform_1, window_bounds = array<i64: 8, 8, 128>}, {pipeline_mode = #tpu.pipeline_mode<synchronous>, transform_indices = @transform_2, window_bounds = array<i64: 8, 8, 128>}, {pipeline_mode = #tpu.pipeline_mode<synchronous>, transform_indices = @transform_3, window_bounds = array<i64: 8, 128>}, {pipeline_mode = #tpu.pipeline_mode<synchronous>, transform_indices = @transform_4, window_bounds = array<i64: 128, 128>}, {pipeline_mode = #tpu.pipeline_mode<synchronous>, transform_indices = @transform_5, window_bounds = array<i64: 1, 128>}, {pipeline_mode = #tpu.pipeline_mode<synchronous>, transform_indices = @transform_6, window_bounds = array<i64: 128, 384>}, {pipeline_mode = #tpu.pipeline_mode<synchronous>, transform_indices = @transform_7, window_bounds = array<i64: 128, 384>}, {pipeline_mode = #tpu.pipeline_mode<synchronous>, transform_indices = @transform_8, window_bounds = array<i64: 1, 384>}, {pipeline_mode = #tpu.pipeline_mode<synchronous>, transform_indices = @transform_9, window_bounds = array<i64: 8, 8, 128>}, {pipeline_mode = #tpu.pipeline_mode<synchronous>, transform_indices = @transform_10, window_bounds = array<i64: 8, 128>}]} {
    %c0 = arith.constant 0 : index
    %c0_0 = arith.constant 0 : index
    %c0_1 = arith.constant 0 : index
    %0 = vector.load %arg2[%c0, %c0_0, %c0_1] : memref<8x8x128xf32, #tpu.memory_space<vmem>>, vector<8x8x128xf32>
    %c0_2 = arith.constant 0 : index
    %c0_3 = arith.constant 0 : index
    %c0_4 = arith.constant 0 : index
    %1 = vector.load %arg3[%c0_2, %c0_3, %c0_4] : memref<8x8x128xf32, #tpu.memory_space<vmem>>, vector<8x8x128xf32>
    %c0_5 = arith.constant 0 : index
    %c0_6 = arith.constant 0 : index
    %2 = vector.load %arg5[%c0_5, %c0_6] : memref<128x128xf32, #tpu.memory_space<vmem>>, vector<128x128xf32>
    %c0_7 = arith.constant 0 : index
    %c0_8 = arith.constant 0 : index
    %3 = vector.load %arg6[%c0_7, %c0_8] : memref<1x128xf32, #tpu.memory_space<vmem>>, vector<1x128xf32>
    %c0_9 = arith.constant 0 : index
    %c0_10 = arith.constant 0 : index
    %4 = vector.load %arg7[%c0_9, %c0_10] : memref<128x384xf32, #tpu.memory_space<vmem>>, vector<128x384xf32>
    %c0_11 = arith.constant 0 : index
    %c0_12 = arith.constant 0 : index
    %5 = vector.load %arg8[%c0_11, %c0_12] : memref<128x384xf32, #tpu.memory_space<vmem>>, vector<128x384xf32>
    %c0_13 = arith.constant 0 : index
    %c0_14 = arith.constant 0 : index
    %6 = vector.load %arg9[%c0_13, %c0_14] : memref<1x384xf32, #tpu.memory_space<vmem>>, vector<1x384xf32>
    %c0_15 = arith.constant 0 : index
    %c0_16 = arith.constant 0 : index
    %7 = vector.load %arg4[%c0_15, %c0_16] : memref<8x128xf32, #tpu.memory_space<vmem>>, vector<8x128xf32>
    %c0_i32 = arith.constant 0 : i32
    %c8_i32 = arith.constant 8 : i32
    %8 = arith.addi %c0_i32, %c8_i32 : i32
    %c1_i32 = arith.constant 1 : i32
    %9 = scf.for %arg12 = %c0_i32 to %8 step %c1_i32 iter_args(%arg13 = %7) -> (vector<8x128xf32>)  : i32 {
      %cst = arith.constant dense<0.000000e+00> : vector<8x128xf32>
      %11 = tpu.matmul %arg13, %2, %cst {dimension_numbers = #tpu.dot_dimension_numbers<[1], [0], [0], [1], [0, 0, 1, 1], [], []>} : vector<8x128xf32>, vector<128x128xf32>, vector<8x128xf32> -> vector<8x128xf32>
      %12 = vector.shape_cast %11 : vector<8x128xf32> to vector<8x1x128xf32>
      %13 = vector.broadcast %12 : vector<8x1x128xf32> to vector<8x8x128xf32>
      %14 = arith.addf %13, %1 : vector<8x8x128xf32>
      %15 = math.tanh %14 : vector<8x8x128xf32>
      %16 = vector.shape_cast %3 : vector<1x128xf32> to vector<1x1x128xf32>
      %17 = vector.broadcast %16 : vector<1x1x128xf32> to vector<8x8x128xf32>
      %18 = arith.mulf %15, %17 : vector<8x8x128xf32>
      %cst_20 = arith.constant dense<0.000000e+00> : vector<8x8xf32>
      %19 = vector.multi_reduction <add>, %18, %cst_20 [2] : vector<8x8x128xf32> to vector<8x8xf32>
      %cst_21 = arith.constant dense<0xFF800000> : vector<8xf32>
      %20 = vector.multi_reduction <maximumf>, %19, %cst_21 [1] : vector<8x8xf32> to vector<8xf32>
      %21 = vector.shape_cast %20 : vector<8xf32> to vector<8x1xf32>
      %22 = vector.broadcast %21 : vector<8x1xf32> to vector<8x8xf32>
      %23 = arith.subf %19, %22 : vector<8x8xf32>
      %24 = math.exp %23 : vector<8x8xf32>
      %cst_22 = arith.constant dense<0.000000e+00> : vector<8xf32>
      %25 = vector.multi_reduction <add>, %24, %cst_22 [1] : vector<8x8xf32> to vector<8xf32>
      %26 = vector.shape_cast %25 : vector<8xf32> to vector<8x1xf32>
      %27 = tpu.reciprocal %26 {approx = true} : vector<8x1xf32> -> vector<8x1xf32>
      %28 = vector.broadcast %27 : vector<8x1xf32> to vector<8x8xf32>
      %29 = arith.mulf %24, %28 : vector<8x8xf32>
      %30 = vector.shape_cast %29 : vector<8x8xf32> to vector<8x8x1xf32>
      %31 = vector.broadcast %30 : vector<8x8x1xf32> to vector<8x8x128xf32>
      %32 = arith.mulf %31, %0 : vector<8x8x128xf32>
      %cst_23 = arith.constant dense<0.000000e+00> : vector<8x128xf32>
      %33 = vector.multi_reduction <add>, %32, %cst_23 [1] : vector<8x8x128xf32> to vector<8x128xf32>
      %34 = arith.index_cast %arg12 : i32 to index
      %c0_24 = arith.constant 0 : index
      %c0_25 = arith.constant 0 : index
      %35 = vector.load %arg1[%34, %c0_24, %c0_25] : memref<8x8x384xf32, #tpu.memory_space<vmem>>, vector<1x8x384xf32>
      %36 = vector.shape_cast %35 : vector<1x8x384xf32> to vector<8x384xf32>
      %cst_26 = arith.constant dense<0.000000e+00> : vector<8x384xf32>
      %37 = tpu.matmul %33, %4, %cst_26 {dimension_numbers = #tpu.dot_dimension_numbers<[1], [0], [0], [1], [0, 0, 1, 1], [], []>} : vector<8x128xf32>, vector<128x384xf32>, vector<8x384xf32> -> vector<8x384xf32>
      %38 = arith.addf %36, %37 : vector<8x384xf32>
      %cst_27 = arith.constant dense<0.000000e+00> : vector<8x384xf32>
      %39 = tpu.matmul %arg13, %5, %cst_27 {dimension_numbers = #tpu.dot_dimension_numbers<[1], [0], [0], [1], [0, 0, 1, 1], [], []>} : vector<8x128xf32>, vector<128x384xf32>, vector<8x384xf32> -> vector<8x384xf32>
      %40 = vector.broadcast %6 : vector<1x384xf32> to vector<8x384xf32>
      %41 = arith.addf %39, %40 : vector<8x384xf32>
      %42 = vector.extract_strided_slice %38 {offsets = [0, 0], sizes = [8, 128], strides = [1, 1]} : vector<8x384xf32> to vector<8x128xf32>
      %43 = vector.extract_strided_slice %41 {offsets = [0, 0], sizes = [8, 128], strides = [1, 1]} : vector<8x384xf32> to vector<8x128xf32>
      %44 = arith.addf %42, %43 : vector<8x128xf32>
      %45 = arith.negf %44 : vector<8x128xf32>
      %46 = math.exp %45 : vector<8x128xf32>
      %cst_28 = arith.constant 1.000000e+00 : f32
      %47 = vector.broadcast %cst_28 : f32 to vector<8x128xf32>
      %48 = arith.addf %47, %46 : vector<8x128xf32>
      %49 = arith.divf %47, %48 : vector<8x128xf32>
      %50 = vector.extract_strided_slice %38 {offsets = [0, 128], sizes = [8, 128], strides = [1, 1]} : vector<8x384xf32> to vector<8x128xf32>
      %51 = vector.extract_strided_slice %41 {offsets = [0, 128], sizes = [8, 128], strides = [1, 1]} : vector<8x384xf32> to vector<8x128xf32>
      %52 = arith.addf %50, %51 : vector<8x128xf32>
      %53 = arith.negf %52 : vector<8x128xf32>
      %54 = math.exp %53 : vector<8x128xf32>
      %cst_29 = arith.constant 1.000000e+00 : f32
      %55 = vector.broadcast %cst_29 : f32 to vector<8x128xf32>
      %56 = arith.addf %55, %54 : vector<8x128xf32>
      %57 = arith.divf %55, %56 : vector<8x128xf32>
      %58 = vector.extract_strided_slice %38 {offsets = [0, 256], sizes = [8, 128], strides = [1, 1]} : vector<8x384xf32> to vector<8x128xf32>
      %59 = vector.extract_strided_slice %41 {offsets = [0, 256], sizes = [8, 128], strides = [1, 1]} : vector<8x384xf32> to vector<8x128xf32>
      %60 = arith.mulf %49, %59 : vector<8x128xf32>
      %61 = arith.addf %58, %60 : vector<8x128xf32>
      %62 = math.tanh %61 : vector<8x128xf32>
      %cst_30 = arith.constant 1.000000e+00 : f32
      %63 = vector.broadcast %cst_30 : f32 to vector<8x128xf32>
      %64 = arith.subf %63, %57 : vector<8x128xf32>
      %65 = arith.mulf %64, %62 : vector<8x128xf32>
      %66 = arith.mulf %57, %arg13 : vector<8x128xf32>
      %67 = arith.addf %65, %66 : vector<8x128xf32>
      %68 = arith.index_cast %arg12 : i32 to index
      %c0_31 = arith.constant 0 : index
      %c0_32 = arith.constant 0 : index
      %69 = vector.load %arg10[%68, %c0_31, %c0_32] : memref<8x8x128xf32, #tpu.memory_space<vmem>>, vector<1x8x128xf32>
      %70 = vector.shape_cast %69 : vector<1x8x128xf32> to vector<8x128xf32>
      %71 = vector.shape_cast %67 : vector<8x128xf32> to vector<1x8x128xf32>
      tpu.vector_store %arg10[%68, %c0_31, %c0_32], %71 {strides = array<i32>} : memref<8x8x128xf32, #tpu.memory_space<vmem>>, vector<1x8x128xf32>,
      scf.yield %67 : vector<8x128xf32>
    }
    %c8_i32_17 = arith.constant 8 : i32
    %c0_18 = arith.constant 0 : index
    %c0_19 = arith.constant 0 : index
    %10 = vector.load %arg11[%c0_18, %c0_19] : memref<8x128xf32, #tpu.memory_space<vmem>>, vector<8x128xf32>
    tpu.vector_store %arg11[%c0_18, %c0_19], %9 {strides = array<i32>} : memref<8x128xf32, #tpu.memory_space<vmem>>, vector<8x128xf32>,
    return
  }
  func.func @transform_0(%arg0: i32) -> (i32, i32, i32) {
    %c0_i32 = arith.constant 0 : i32
    %c0_i32_0 = arith.constant 0 : i32
    %c0_i32_1 = arith.constant 0 : i32
    %c0_i32_2 = arith.constant 0 : i32
    return %c0_i32, %c0_i32_0, %c0_i32_1 : i32, i32, i32
  }
  func.func @transform_1(%arg0: i32) -> (i32, i32, i32) {
    %c0_i32 = arith.constant 0 : i32
    %c0_i32_0 = arith.constant 0 : i32
    %c0_i32_1 = arith.constant 0 : i32
    %c0_i32_2 = arith.constant 0 : i32
    return %c0_i32, %c0_i32_0, %c0_i32_1 : i32, i32, i32
  }
  func.func @transform_2(%arg0: i32) -> (i32, i32, i32) {
    %c0_i32 = arith.constant 0 : i32
    %c0_i32_0 = arith.constant 0 : i32
    %c0_i32_1 = arith.constant 0 : i32
    %c0_i32_2 = arith.constant 0 : i32
    return %c0_i32, %c0_i32_0, %c0_i32_1 : i32, i32, i32
  }
  func.func @transform_3(%arg0: i32) -> (i32, i32) {
    %c0_i32 = arith.constant 0 : i32
    %c0_i32_0 = arith.constant 0 : i32
    %c0_i32_1 = arith.constant 0 : i32
    return %c0_i32, %c0_i32_0 : i32, i32
  }
  func.func @transform_4(%arg0: i32) -> (i32, i32) {
    %c0_i32 = arith.constant 0 : i32
    %c0_i32_0 = arith.constant 0 : i32
    %c0_i32_1 = arith.constant 0 : i32
    return %c0_i32, %c0_i32_0 : i32, i32
  }
  func.func @transform_5(%arg0: i32) -> (i32, i32) {
    %c0_i32 = arith.constant 0 : i32
    %c0_i32_0 = arith.constant 0 : i32
    %c0_i32_1 = arith.constant 0 : i32
    return %c0_i32, %c0_i32_0 : i32, i32
  }
  func.func @transform_6(%arg0: i32) -> (i32, i32) {
    %c0_i32 = arith.constant 0 : i32
    %c0_i32_0 = arith.constant 0 : i32
    %c0_i32_1 = arith.constant 0 : i32
    return %c0_i32, %c0_i32_0 : i32, i32
  }
  func.func @transform_7(%arg0: i32) -> (i32, i32) {
    %c0_i32 = arith.constant 0 : i32
    %c0_i32_0 = arith.constant 0 : i32
    %c0_i32_1 = arith.constant 0 : i32
    return %c0_i32, %c0_i32_0 : i32, i32
  }
  func.func @transform_8(%arg0: i32) -> (i32, i32) {
    %c0_i32 = arith.constant 0 : i32
    %c0_i32_0 = arith.constant 0 : i32
    %c0_i32_1 = arith.constant 0 : i32
    return %c0_i32, %c0_i32_0 : i32, i32
  }
  func.func @transform_9(%arg0: i32) -> (i32, i32, i32) {
    %c0_i32 = arith.constant 0 : i32
    %c0_i32_0 = arith.constant 0 : i32
    %c0_i32_1 = arith.constant 0 : i32
    %c0_i32_2 = arith.constant 0 : i32
    return %c0_i32, %c0_i32_0, %c0_i32_1 : i32, i32, i32
  }
  func.func @transform_10(%arg0: i32) -> (i32, i32) {
    %c0_i32 = arith.constant 0 : i32
    %c0_i32_0 = arith.constant 0 : i32
    %c0_i32_1 = arith.constant 0 : i32
    return %c0_i32, %c0_i32_0 : i32, i32
  }
}

module attributes {stable_mosaic.version = 11 : i64} {
  func.func @_matmul_bias_kernel(%arg0: i32, %arg1: i32, %arg2: memref<64x128xf32, #tpu.memory_space<vmem>>, %arg3: memref<128x128xf32, #tpu.memory_space<vmem>>, %arg4: memref<1x128xf32, #tpu.memory_space<vmem>>, %arg5: memref<64x128xf32, #tpu.memory_space<vmem>>) attributes {dimension_semantics = [#tpu.dimension_semantics<parallel>, #tpu.dimension_semantics<parallel>], iteration_bounds = array<i64: 1, 1>, scalar_prefetch = 0 : i64, scratch_operands = 0 : i64, tpu.core_type = #tpu.core_type<tc>, window_params = [{transform_indices = @transform_0, window_bounds = array<i64: 64, 128>}, {transform_indices = @transform_1, window_bounds = array<i64: 128, 128>}, {transform_indices = @transform_2, window_bounds = array<i64: 1, 128>}, {transform_indices = @transform_3, window_bounds = array<i64: 64, 128>}]} {
    %c0 = arith.constant 0 : index
    %c0_0 = arith.constant 0 : index
    %0 = vector.load %arg2[%c0, %c0_0] : memref<64x128xf32, #tpu.memory_space<vmem>>, vector<64x128xf32>
    %c0_1 = arith.constant 0 : index
    %c0_2 = arith.constant 0 : index
    %1 = vector.load %arg3[%c0_1, %c0_2] : memref<128x128xf32, #tpu.memory_space<vmem>>, vector<128x128xf32>
    %cst = arith.constant dense<0.000000e+00> : vector<64x128xf32>
    %2 = tpu.matmul %0, %1, %cst {dimension_numbers = #tpu.dot_dimension_numbers<[1], [0], [0], [1], [0, 0, 1, 1], [], []>} : vector<64x128xf32>, vector<128x128xf32>, vector<64x128xf32> -> vector<64x128xf32>
    %c0_3 = arith.constant 0 : index
    %c0_4 = arith.constant 0 : index
    %3 = vector.load %arg4[%c0_3, %c0_4] : memref<1x128xf32, #tpu.memory_space<vmem>>, vector<1x128xf32>
    %4 = vector.broadcast %3 : vector<1x128xf32> to vector<64x128xf32>
    %5 = arith.addf %2, %4 : vector<64x128xf32>
    %c0_5 = arith.constant 0 : index
    %c0_6 = arith.constant 0 : index
    %6 = vector.load %arg5[%c0_5, %c0_6] : memref<64x128xf32, #tpu.memory_space<vmem>>, vector<64x128xf32>
    tpu.vector_store %arg5[%c0_5, %c0_6], %5 {strides = array<i32>} : memref<64x128xf32, #tpu.memory_space<vmem>>, vector<64x128xf32>,
    return
  }
  func.func @transform_0(%arg0: i32, %arg1: i32) -> (i32, i32) {
    %c0_i32 = arith.constant 0 : i32
    %c0_i32_0 = arith.constant 0 : i32
    return %arg0, %c0_i32 : i32, i32
  }
  func.func @transform_1(%arg0: i32, %arg1: i32) -> (i32, i32) {
    %c0_i32 = arith.constant 0 : i32
    %c0_i32_0 = arith.constant 0 : i32
    return %c0_i32, %arg1 : i32, i32
  }
  func.func @transform_2(%arg0: i32, %arg1: i32) -> (i32, i32) {
    %c0_i32 = arith.constant 0 : i32
    %c0_i32_0 = arith.constant 0 : i32
    return %c0_i32, %arg1 : i32, i32
  }
  func.func @transform_3(%arg0: i32, %arg1: i32) -> (i32, i32) {
    %c0_i32 = arith.constant 0 : i32
    return %arg0, %arg1 : i32, i32
  }
}

</mosaic_0001>

<llo_original>
// kernel: encoder_decoder_forward.8
$region0: #{encoder_decoder_forward.8}
  #allocation0 [shape = 'u32[]', space=smem, size = 0x4, offset = 0x4, fixed_abs, tag = 'smem constant byte address 0x4 - core index']
  #allocation1 [shape = 'u32[144,128]{1,0:T(1,128)}', space=vmem, size = 0x12000, scoped, tag = 'internal scratch']
  %s0 = inlined_call_operand.vmem [shape: f32[64,128], index: 0, kind: input, shape index: {}]
  %s1 = inlined_call_operand.vmem [shape: f32[128,128], index: 1, kind: input, shape index: {}]
  %s2 = inlined_call_operand.vmem [shape: f32[1,128], index: 2, kind: input, shape index: {}]
  %s3 = inlined_call_operand.vmem [shape: f32[64,128], index: 3, kind: output, shape index: {}]
  %s4 = sld [smem:[#allocation0]]
  $region22: #{encoder_decoder_forward.8} parent=0
    _
  %s6 = ssub.s32 1, %s4
  %s7 = scalar_select 0, %s6, %s4
  // Predicated region
  $region2: #{encoder_decoder_forward.8} parent=0 // pred_check
    _
  $region3: #{encoder_decoder_forward.8} parent=0 // pred_check_branch
    %9 = sbr.rel (0) target = $region5
  $region4: #{encoder_decoder_forward.8} parent=0 // pred_region
    _
  $region5: #{encoder_decoder_forward.8} parent=0 // pred_fallthru
    _
  // Predicated region
  $region6: #{encoder_decoder_forward.8} parent=0 // pred_check
    _
  $region7: #{encoder_decoder_forward.8} parent=0 // pred_check_branch
    %11 = sbr.rel (0) target = $region9
  $region8: #{encoder_decoder_forward.8} parent=0 // pred_region
    _
  $region9: #{encoder_decoder_forward.8} parent=0 // pred_fallthru
    _
  // Predicated region
  $region10: #{encoder_decoder_forward.8} parent=0 // pred_check
    _
  $region11: #{encoder_decoder_forward.8} parent=0 // pred_check_branch
    %13 = sbr.rel (0) target = $region13
  $region12: #{encoder_decoder_forward.8} parent=0 // pred_region
    _
  $region13: #{encoder_decoder_forward.8} parent=0 // pred_fallthru
    _
  %v14 = vld [vmem:[%s0] sm:$0xff]
  %v15 = vld [vmem:[%s0 + $0x8] sm:$0xff]
  %v16 = vld [vmem:[%s0 + $0x10] sm:$0xff]
  %v17 = vld [vmem:[%s0 + $0x18] sm:$0xff]
  %v18 = vld [vmem:[%s0 + $0x20] sm:$0xff]
  %v19 = vld [vmem:[%s0 + $0x28] sm:$0xff]
  %v20 = vld [vmem:[%s0 + $0x30] sm:$0xff]
  %v21 = vld [vmem:[%s0 + $0x38] sm:$0xff]
  %v22 = vld [vmem:[%s1] sm:$0xff]
  %v23 = vld [vmem:[%s1 + $0x8] sm:$0xff]
  %v24 = vld [vmem:[%s1 + $0x10] sm:$0xff]
  %v25 = vld [vmem:[%s1 + $0x18] sm:$0xff]
  %v26 = vld [vmem:[%s1 + $0x20] sm:$0xff]
  %v27 = vld [vmem:[%s1 + $0x28] sm:$0xff]
  %v28 = vld [vmem:[%s1 + $0x30] sm:$0xff]
  %v29 = vld [vmem:[%s1 + $0x38] sm:$0xff]
  %v30 = vld [vmem:[%s1 + $0x40] sm:$0xff]
  %v31 = vld [vmem:[%s1 + $0x48] sm:$0xff]
  %v32 = vld [vmem:[%s1 + $0x50] sm:$0xff]
  %v33 = vld [vmem:[%s1 + $0x58] sm:$0xff]
  %v34 = vld [vmem:[%s1 + $0x60] sm:$0xff]
  %v35 = vld [vmem:[%s1 + $0x68] sm:$0xff]
  %v36 = vld [vmem:[%s1 + $0x70] sm:$0xff]
  %v37 = vld [vmem:[%s1 + $0x78] sm:$0xff]
  %v38 = vld [vmem:[%s2] sm:$0x1]
  %v40 = vlaneseq
  %v41 = vshrl.u32 %v40, 7
  %v42 = vsub.s32 0, %v41
  %v43 = vrot.slane %v38, %v42
  %45 = vmatprep.subr.mxu0 0.0
  %46 = vmatpush1.msra.mxu0 %v22
  %47 = vmatprep.subr.mxu0 0.0
  %48 = vmatpush1.msra.mxu0 %v23
  %49 = vmatprep.subr.mxu0 0.0
  %50 = vmatpush1.msra.mxu0 %v24
  %51 = vmatprep.subr.mxu0 0.0
  %52 = vmatpush1.msra.mxu0 %v25
  %53 = vmatprep.subr.mxu0 0.0
  %54 = vmatpush1.msra.mxu0 %v26
  %55 = vmatprep.subr.mxu0 0.0
  %56 = vmatpush1.msra.mxu0 %v27
  %57 = vmatprep.subr.mxu0 0.0
  %58 = vmatpush1.msra.mxu0 %v28
  %59 = vmatprep.subr.mxu0 0.0
  %60 = vmatpush1.msra.mxu0 %v29
  %61 = vmatprep.subr.mxu0 0.0
  %62 = vmatpush1.msra.mxu0 %v30
  %63 = vmatprep.subr.mxu0 0.0
  %64 = vmatpush1.msra.mxu0 %v31
  %65 = vmatprep.subr.mxu0 0.0
  %66 = vmatpush1.msra.mxu0 %v32
  %67 = vmatprep.subr.mxu0 0.0
  %68 = vmatpush1.msra.mxu0 %v33
  %69 = vmatprep.subr.mxu0 0.0
  %70 = vmatpush1.msra.mxu0 %v34
  %71 = vmatprep.subr.mxu0 0.0
  %72 = vmatpush1.msra.mxu0 %v35
  %73 = vmatprep.subr.mxu0 0.0
  %74 = vmatpush1.msra.mxu0 %v36
  %75 = vmatprep.subr.mxu0 0.0
  %76 = vmatpush1.msra.mxu0 %v37
  %77 = vmatprep.subr.mxu0 0.0
  %78 = vmatpush1.msra.mxu0 0.0
  %79 = vmatprep.subr.mxu0 0.0
  %80 = vmatpush1.msra.mxu0 0.0
  %81 = vmatprep.subr.mxu0 0.0
  %82 = vmatpush1.msra.mxu0 0.0
  %83 = vmatprep.subr.mxu0 0.0
  %84 = vmatpush1.msra.mxu0 0.0
  %85 = vmatprep.subr.mxu0 0.0
  %86 = vmatpush1.msra.mxu0 0.0
  %87 = vmatprep.subr.mxu0 0.0
  %88 = vmatpush1.msra.mxu0 0.0
  %89 = vmatprep.subr.mxu0 0.0
  %90 = vmatpush1.msra.mxu0 0.0
  %91 = vmatprep.subr.mxu0 0.0
  %92 = vmatpush1.msra.mxu0 0.0
  %93 = vmatprep.subr.mxu0 0.0
  %94 = vmatpush1.msra.mxu0 0.0
  %95 = vmatprep.subr.mxu0 0.0
  %96 = vmatpush1.msra.mxu0 0.0
  %97 = vmatprep.subr.mxu0 0.0
  %98 = vmatpush1.msra.mxu0 0.0
  %99 = vmatprep.subr.mxu0 0.0
  %100 = vmatpush1.msra.mxu0 0.0
  %101 = vmatprep.subr.mxu0 0.0
  %102 = vmatpush1.msra.mxu0 0.0
  %103 = vmatprep.subr.mxu0 0.0
  %104 = vmatpush1.msra.mxu0 0.0
  %105 = vmatprep.subr.mxu0 0.0
  %106 = vmatpush1.msra.mxu0 0.0
  %107 = vmatprep.subr.mxu0 0.0
  %108 = vmatpush1.msra.mxu0 0.0
  %109 = vmatprep.mubr.f32.mxu0 0.0
  %110 = vmatmul.mubr.f32.gmra.mrb[0].mxu0 %v14
  %v111 = vpop.f32.mrb[0].mxu0
  %v112 = vadd.f32 %v43, %v111
  %v113 = vpop.f32.mrb[0].mxu0
  %114 = vmatprep.mubr.f32.mxu0 0.0
  %115 = vmatmul.mubr.f32.gmra.mrb[0].mxu0 %v15
  %v116 = vpop.f32.mrb[0].mxu0
  %v117 = vadd.f32 %v43, %v116
  %v118 = vpop.f32.mrb[0].mxu0
  %119 = vmatprep.mubr.f32.mxu0 0.0
  %120 = vmatmul.mubr.f32.gmra.mrb[0].mxu0 %v16
  %v121 = vpop.f32.mrb[0].mxu0
  %v122 = vadd.f32 %v43, %v121
  %v123 = vpop.f32.mrb[0].mxu0
  %124 = vmatprep.mubr.f32.mxu0 0.0
  %125 = vmatmul.mubr.f32.gmra.mrb[0].mxu0 %v17
  %v126 = vpop.f32.mrb[0].mxu0
  %v127 = vadd.f32 %v43, %v126
  %v128 = vpop.f32.mrb[0].mxu0
  %129 = vmatprep.mubr.f32.mxu0 0.0
  %130 = vmatmul.mubr.f32.gmra.mrb[0].mxu0 %v18
  %v131 = vpop.f32.mrb[0].mxu0
  %v132 = vadd.f32 %v43, %v131
  %v133 = vpop.f32.mrb[0].mxu0
  %134 = vmatprep.mubr.f32.mxu0 0.0
  %135 = vmatmul.mubr.f32.gmra.mrb[0].mxu0 %v19
  %v136 = vpop.f32.mrb[0].mxu0
  %v137 = vadd.f32 %v43, %v136
  %v138 = vpop.f32.mrb[0].mxu0
  %139 = vmatprep.mubr.f32.mxu0 0.0
  %140 = vmatmul.mubr.f32.gmra.mrb[0].mxu0 %v20
  %v141 = vpop.f32.mrb[0].mxu0
  %v142 = vadd.f32 %v43, %v141
  %v143 = vpop.f32.mrb[0].mxu0
  %144 = vmatprep.mubr.f32.mxu0 0.0
  %145 = vmatmul.mubr.f32.gmra.mrb[0].mxu0 %v21
  %v146 = vpop.f32.mrb[0].mxu0
  %v147 = vadd.f32 %v43, %v146
  %v148 = vpop.f32.mrb[0].mxu0
  %149 = vdwg.mxu0
  %150 = vst [vmem:[%s3] sm:$0xff] %v112
  %151 = vst [vmem:[%s3 + $0x8] sm:$0xff] %v117
  %152 = vst [vmem:[%s3 + $0x10] sm:$0xff] %v122
  %153 = vst [vmem:[%s3 + $0x18] sm:$0xff] %v127
  %154 = vst [vmem:[%s3 + $0x20] sm:$0xff] %v132
  %155 = vst [vmem:[%s3 + $0x28] sm:$0xff] %v137
  %156 = vst [vmem:[%s3 + $0x30] sm:$0xff] %v142
  %157 = vst [vmem:[%s3 + $0x38] sm:$0xff] %v147
  // Predicated region
  $region14: #{encoder_decoder_forward.8} parent=0 // pred_check
    _
  $region15: #{encoder_decoder_forward.8} parent=0 // pred_check_branch
    %159 = sbr.rel (0) target = $region17
  $region16: #{encoder_decoder_forward.8} parent=0 // pred_region
    _
  $region17: #{encoder_decoder_forward.8} parent=0 // pred_fallthru
    _
  // Predicated region
  $region18: #{encoder_decoder_forward.8} parent=0 // pred_check
    _
  $region19: #{encoder_decoder_forward.8} parent=0 // pred_check_branch
    %161 = sbr.rel (0) target = $region21
  $region20: #{encoder_decoder_forward.8} parent=0 // pred_region
    _
  $region21: #{encoder_decoder_forward.8} parent=0 // pred_fallthru
    _

// kernel: encoder_decoder_forward.6
$region0: #{encoder_decoder_forward.6}
  #allocation0 [shape = 'u32[]', space=smem, size = 0x4, offset = 0x4, fixed_abs, tag = 'smem constant byte address 0x4 - core index']
  #allocation1 [shape = 'u32[144,128]{1,0:T(1,128)}', space=vmem, size = 0x12000, scoped, tag = 'internal scratch']
  %s0 = inlined_call_operand.vmem [shape: f32[64,32], index: 0, kind: input, shape index: {}]
  %s1 = inlined_call_operand.vmem [shape: f32[32,384], index: 1, kind: input, shape index: {}]
  %s2 = inlined_call_operand.vmem [shape: f32[1,384], index: 2, kind: input, shape index: {}]
  %s3 = inlined_call_operand.vmem [shape: f32[64,384], index: 3, kind: output, shape index: {}]
  %s4 = sld [smem:[#allocation0]]
  $region22: #{encoder_decoder_forward.6} parent=0
    _
  %s6 = ssub.s32 1, %s4
  %s7 = scalar_select 0, %s6, %s4
  // Predicated region
  $region2: #{encoder_decoder_forward.6} parent=0 // pred_check
    _
  $region3: #{encoder_decoder_forward.6} parent=0 // pred_check_branch
    %9 = sbr.rel (0) target = $region5
  $region4: #{encoder_decoder_forward.6} parent=0 // pred_region
    _
  $region5: #{encoder_decoder_forward.6} parent=0 // pred_fallthru
    _
  // Predicated region
  $region6: #{encoder_decoder_forward.6} parent=0 // pred_check
    _
  $region7: #{encoder_decoder_forward.6} parent=0 // pred_check_branch
    %11 = sbr.rel (0) target = $region9
  $region8: #{encoder_decoder_forward.6} parent=0 // pred_region
    _
  $region9: #{encoder_decoder_forward.6} parent=0 // pred_fallthru
    _
  // Predicated region
  $region10: #{encoder_decoder_forward.6} parent=0 // pred_check
    _
  $region11: #{encoder_decoder_forward.6} parent=0 // pred_check_branch
    %13 = sbr.rel (0) target = $region13
  $region12: #{encoder_decoder_forward.6} parent=0 // pred_region
    _
  $region13: #{encoder_decoder_forward.6} parent=0 // pred_fallthru
    _
  %v14 = vld [vmem:[%s0] sm:$0xff]
  %v15 = vld [vmem:[%s0 + $0x8] sm:$0xff]
  %v16 = vld [vmem:[%s0 + $0x10] sm:$0xff]
  %v17 = vld [vmem:[%s0 + $0x18] sm:$0xff]
  %v18 = vld [vmem:[%s0 + $0x20] sm:$0xff]
  %v19 = vld [vmem:[%s0 + $0x28] sm:$0xff]
  %v20 = vld [vmem:[%s0 + $0x30] sm:$0xff]
  %v21 = vld [vmem:[%s0 + $0x38] sm:$0xff]
  %v22 = vld [vmem:[%s1] sm:$0xff]
  %v23 = vld [vmem:[%s1 + $0x8] sm:$0xff]
  %v24 = vld [vmem:[%s1 + $0x10] sm:$0xff]
  %v25 = vld [vmem:[%s1 + $0x18] sm:$0xff]
  %v26 = vld [vmem:[%s1 + $0x20] sm:$0xff]
  %v27 = vld [vmem:[%s1 + $0x28] sm:$0xff]
  %v28 = vld [vmem:[%s1 + $0x30] sm:$0xff]
  %v29 = vld [vmem:[%s1 + $0x38] sm:$0xff]
  %v30 = vld [vmem:[%s1 + $0x40] sm:$0xff]
  %v31 = vld [vmem:[%s1 + $0x48] sm:$0xff]
  %v32 = vld [vmem:[%s1 + $0x50] sm:$0xff]
  %v33 = vld [vmem:[%s1 + $0x58] sm:$0xff]
  %v34 = vld [vmem:[%s2] sm:$0x7]
  %v36 = vlaneseq
  %v37 = vshrl.u32 %v36, 7
  %v38 = vsub.s32 0, %v37
  %v39 = vrot.slane %v34, %v38
  %v40 = vlaneseq
  %v41 = vshrl.u32 %v40, 7
  %v42 = vsub.s32 1, %v41
  %v43 = vrot.slane %v34, %v42
  %v44 = vlaneseq
  %v45 = vshrl.u32 %v44, 7
  %v46 = vsub.s32 2, %v45
  %v47 = vrot.slane %v34, %v46
  %vm51 = vcmask 261120
  %v53 = vsel %vm51, %v14, 0
  %v56 = vsel %vm51, %v15, 0
  %v59 = vsel %vm51, %v16, 0
  %v62 = vsel %vm51, %v17, 0
  %v65 = vsel %vm51, %v18, 0
  %v68 = vsel %vm51, %v19, 0
  %v71 = vsel %vm51, %v20, 0
  %v74 = vsel %vm51, %v21, 0
  %76 = vmatprep.subr.mxu0 %v23
  %77 = vmatpush1.msra.mxu0 %v22
  %78 = vmatprep.subr.mxu0 %v26
  %79 = vmatpush1.msra.mxu0 %v25
  %80 = vmatprep.subr.mxu0 %v29
  %81 = vmatpush1.msra.mxu0 %v28
  %82 = vmatprep.subr.mxu0 %v32
  %83 = vmatpush1.msra.mxu0 %v31
  %84 = vmatprep.subr.mxu0 0.0
  %85 = vmatpush1.msra.mxu0 0.0
  %86 = vmatprep.subr.mxu0 0.0
  %87 = vmatpush1.msra.mxu0 0.0
  %88 = vmatprep.subr.mxu0 0.0
  %89 = vmatpush1.msra.mxu0 0.0
  %90 = vmatprep.subr.mxu0 0.0
  %91 = vmatpush1.msra.mxu0 0.0
  %92 = vmatprep.subr.mxu0 0.0
  %93 = vmatpush1.msra.mxu0 0.0
  %94 = vmatprep.subr.mxu0 0.0
  %95 = vmatpush1.msra.mxu0 0.0
  %96 = vmatprep.subr.mxu0 0.0
  %97 = vmatpush1.msra.mxu0 0.0
  %98 = vmatprep.subr.mxu0 0.0
  %99 = vmatpush1.msra.mxu0 0.0
  %100 = vmatprep.subr.mxu0 0.0
  %101 = vmatpush1.msra.mxu0 0.0
  %102 = vmatprep.subr.mxu0 0.0
  %103 = vmatpush1.msra.mxu0 0.0
  %104 = vmatprep.subr.mxu0 0.0
  %105 = vmatpush1.msra.mxu0 0.0
  %106 = vmatprep.subr.mxu0 0.0
  %107 = vmatpush1.msra.mxu0 0.0
  %108 = vmatprep.subr.mxu0 0.0
  %109 = vmatpush1.msra.mxu0 0.0
  %110 = vmatprep.subr.mxu0 0.0
  %111 = vmatpush1.msra.mxu0 0.0
  %112 = vmatprep.subr.mxu0 0.0
  %113 = vmatpush1.msra.mxu0 0.0
  %114 = vmatprep.subr.mxu0 0.0
  %115 = vmatpush1.msra.mxu0 0.0
  %116 = vmatprep.subr.mxu0 0.0
  %117 = vmatpush1.msra.mxu0 0.0
  %118 = vmatprep.subr.mxu0 0.0
  %119 = vmatpush1.msra.mxu0 0.0
  %120 = vmatprep.subr.mxu0 0.0
  %121 = vmatpush1.msra.mxu0 0.0
  %122 = vmatprep.subr.mxu0 0.0
  %123 = vmatpush1.msra.mxu0 0.0
  %124 = vmatprep.subr.mxu0 0.0
  %125 = vmatpush1.msra.mxu0 0.0
  %126 = vmatprep.subr.mxu0 0.0
  %127 = vmatpush1.msra.mxu0 0.0
  %128 = vmatprep.subr.mxu0 0.0
  %129 = vmatpush1.msra.mxu0 0.0
  %130 = vmatprep.subr.mxu0 0.0
  %131 = vmatpush1.msra.mxu0 0.0
  %132 = vmatprep.subr.mxu0 0.0
  %133 = vmatpush1.msra.mxu0 0.0
  %134 = vmatprep.subr.mxu0 0.0
  %135 = vmatpush1.msra.mxu0 0.0
  %136 = vmatprep.subr.mxu0 0.0
  %137 = vmatpush1.msra.mxu0 0.0
  %138 = vmatprep.subr.mxu0 0.0
  %139 = vmatpush1.msra.mxu0 0.0
  %140 = vmatprep.mubr.f32.mxu0 0.0
  %141 = vmatmul.mubr.f32.gmra.mrb[0].mxu0 %v53
  %v142 = vpop.f32.mrb[0].mxu0
  %v143 = vadd.f32 %v39, %v142
  %v144 = vpop.f32.mrb[0].mxu0
  %v145 = vadd.f32 %v43, %v144
  %146 = vmatprep.mubr.f32.mxu0 0.0
  %147 = vmatmul.mubr.f32.gmra.mrb[0].mxu0 %v56
  %v148 = vpop.f32.mrb[0].mxu0
  %v149 = vadd.f32 %v39, %v148
  %v150 = vpop.f32.mrb[0].mxu0
  %v151 = vadd.f32 %v43, %v150
  %152 = vmatprep.mubr.f32.mxu0 0.0
  %153 = vmatmul.mubr.f32.gmra.mrb[0].mxu0 %v59
  %v154 = vpop.f32.mrb[0].mxu0
  %v155 = vadd.f32 %v39, %v154
  %v156 = vpop.f32.mrb[0].mxu0
  %v157 = vadd.f32 %v43, %v156
  %158 = vmatprep.mubr.f32.mxu0 0.0
  %159 = vmatmul.mubr.f32.gmra.mrb[0].mxu0 %v62
  %v160 = vpop.f32.mrb[0].mxu0
  %v161 = vadd.f32 %v39, %v160
  %v162 = vpop.f32.mrb[0].mxu0
  %v163 = vadd.f32 %v43, %v162
  %164 = vmatprep.mubr.f32.mxu0 0.0
  %165 = vmatmul.mubr.f32.gmra.mrb[0].mxu0 %v65
  %v166 = vpop.f32.mrb[0].mxu0
  %v167 = vadd.f32 %v39, %v166
  %v168 = vpop.f32.mrb[0].mxu0
  %v169 = vadd.f32 %v43, %v168
  %170 = vmatprep.mubr.f32.mxu0 0.0
  %171 = vmatmul.mubr.f32.gmra.mrb[0].mxu0 %v68
  %v172 = vpop.f32.mrb[0].mxu0
  %v173 = vadd.f32 %v39, %v172
  %v174 = vpop.f32.mrb[0].mxu0
  %v175 = vadd.f32 %v43, %v174
  %176 = vmatprep.mubr.f32.mxu0 0.0
  %177 = vmatmul.mubr.f32.gmra.mrb[0].mxu0 %v71
  %v178 = vpop.f32.mrb[0].mxu0
  %v179 = vadd.f32 %v39, %v178
  %v180 = vpop.f32.mrb[0].mxu0
  %v181 = vadd.f32 %v43, %v180
  %182 = vmatprep.mubr.f32.mxu0 0.0
  %183 = vmatmul.mubr.f32.gmra.mrb[0].mxu0 %v74
  %v184 = vpop.f32.mrb[0].mxu0
  %v185 = vadd.f32 %v39, %v184
  %v186 = vpop.f32.mrb[0].mxu0
  %v187 = vadd.f32 %v43, %v186
  %188 = vdwg.mxu0
  %189 = vmatprep.subr.mxu0 0.0
  %190 = vmatpush1.msra.mxu0 %v24
  %191 = vmatprep.subr.mxu0 0.0
  %192 = vmatpush1.msra.mxu0 %v27
  %193 = vmatprep.subr.mxu0 0.0
  %194 = vmatpush1.msra.mxu0 %v30
  %195 = vmatprep.subr.mxu0 0.0
  %196 = vmatpush1.msra.mxu0 %v33
  %197 = vmatprep.subr.mxu0 0.0
  %198 = vmatpush1.msra.mxu0 0.0
  %199 = vmatprep.subr.mxu0 0.0
  %200 = vmatpush1.msra.mxu0 0.0
  %201 = vmatprep.subr.mxu0 0.0
  %202 = vmatpush1.msra.mxu0 0.0
  %203 = vmatprep.subr.mxu0 0.0
  %204 = vmatpush1.msra.mxu0 0.0
  %205 = vmatprep.subr.mxu0 0.0
  %206 = vmatpush1.msra.mxu0 0.0
  %207 = vmatprep.subr.mxu0 0.0
  %208 = vmatpush1.msra.mxu0 0.0
  %209 = vmatprep.subr.mxu0 0.0
  %210 = vmatpush1.msra.mxu0 0.0
  %211 = vmatprep.subr.mxu0 0.0
  %212 = vmatpush1.msra.mxu0 0.0
  %213 = vmatprep.subr.mxu0 0.0
  %214 = vmatpush1.msra.mxu0 0.0
  %215 = vmatprep.subr.mxu0 0.0
  %216 = vmatpush1.msra.mxu0 0.0
  %217 = vmatprep.subr.mxu0 0.0
  %218 = vmatpush1.msra.mxu0 0.0
  %219 = vmatprep.subr.mxu0 0.0
  %220 = vmatpush1.msra.mxu0 0.0
  %221 = vmatprep.subr.mxu0 0.0
  %222 = vmatpush1.msra.mxu0 0.0
  %223 = vmatprep.subr.mxu0 0.0
  %224 = vmatpush1.msra.mxu0 0.0
  %225 = vmatprep.subr.mxu0 0.0
  %226 = vmatpush1.msra.mxu0 0.0
  %227 = vmatprep.subr.mxu0 0.0
  %228 = vmatpush1.msra.mxu0 0.0
  %229 = vmatprep.subr.mxu0 0.0
  %230 = vmatpush1.msra.mxu0 0.0
  %231 = vmatprep.subr.mxu0 0.0
  %232 = vmatpush1.msra.mxu0 0.0
  %233 = vmatprep.subr.mxu0 0.0
  %234 = vmatpush1.msra.mxu0 0.0
  %235 = vmatprep.subr.mxu0 0.0
  %236 = vmatpush1.msra.mxu0 0.0
  %237 = vmatprep.subr.mxu0 0.0
  %238 = vmatpush1.msra.mxu0 0.0
  %239 = vmatprep.subr.mxu0 0.0
  %240 = vmatpush1.msra.mxu0 0.0
  %241 = vmatprep.subr.mxu0 0.0
  %242 = vmatpush1.msra.mxu0 0.0
  %243 = vmatprep.subr.mxu0 0.0
  %244 = vmatpush1.msra.mxu0 0.0
  %245 = vmatprep.subr.mxu0 0.0
  %246 = vmatpush1.msra.mxu0 0.0
  %247 = vmatprep.subr.mxu0 0.0
  %248 = vmatpush1.msra.mxu0 0.0
  %249 = vmatprep.subr.mxu0 0.0
  %250 = vmatpush1.msra.mxu0 0.0
  %251 = vmatprep.subr.mxu0 0.0
  %252 = vmatpush1.msra.mxu0 0.0
  %253 = vmatprep.mubr.f32.mxu0 0.0
  %254 = vmatmul.mubr.f32.gmra.mrb[0].mxu0 %v53
  %v255 = vpop.f32.mrb[0].mxu0
  %v256 = vadd.f32 %v47, %v255
  %v257 = vpop.f32.mrb[0].mxu0
  %258 = vmatprep.mubr.f32.mxu0 0.0
  %259 = vmatmul.mubr.f32.gmra.mrb[0].mxu0 %v56
  %v260 = vpop.f32.mrb[0].mxu0
  %v261 = vadd.f32 %v47, %v260
  %v262 = vpop.f32.mrb[0].mxu0
  %263 = vmatprep.mubr.f32.mxu0 0.0
  %264 = vmatmul.mubr.f32.gmra.mrb[0].mxu0 %v59
  %v265 = vpop.f32.mrb[0].mxu0
  %v266 = vadd.f32 %v47, %v265
  %v267 = vpop.f32.mrb[0].mxu0
  %268 = vmatprep.mubr.f32.mxu0 0.0
  %269 = vmatmul.mubr.f32.gmra.mrb[0].mxu0 %v62
  %v270 = vpop.f32.mrb[0].mxu0
  %v271 = vadd.f32 %v47, %v270
  %v272 = vpop.f32.mrb[0].mxu0
  %273 = vmatprep.mubr.f32.mxu0 0.0
  %274 = vmatmul.mubr.f32.gmra.mrb[0].mxu0 %v65
  %v275 = vpop.f32.mrb[0].mxu0
  %v276 = vadd.f32 %v47, %v275
  %v277 = vpop.f32.mrb[0].mxu0
  %278 = vmatprep.mubr.f32.mxu0 0.0
  %279 = vmatmul.mubr.f32.gmra.mrb[0].mxu0 %v68
  %v280 = vpop.f32.mrb[0].mxu0
  %v281 = vadd.f32 %v47, %v280
  %v282 = vpop.f32.mrb[0].mxu0
  %283 = vmatprep.mubr.f32.mxu0 0.0
  %284 = vmatmul.mubr.f32.gmra.mrb[0].mxu0 %v71
  %v285 = vpop.f32.mrb[0].mxu0
  %v286 = vadd.f32 %v47, %v285
  %v287 = vpop.f32.mrb[0].mxu0
  %288 = vmatprep.mubr.f32.mxu0 0.0
  %289 = vmatmul.mubr.f32.gmra.mrb[0].mxu0 %v74
  %v290 = vpop.f32.mrb[0].mxu0
  %v291 = vadd.f32 %v47, %v290
  %v292 = vpop.f32.mrb[0].mxu0
  %293 = vdwg.mxu0
  %294 = vst [vmem:[%s3] sm:$0xff] %v143
  %295 = vst [vmem:[%s3 + $0x8] sm:$0xff] %v145
  %296 = vst [vmem:[%s3 + $0x10] sm:$0xff] %v256
  %297 = vst [vmem:[%s3 + $0x18] sm:$0xff] %v149
  %298 = vst [vmem:[%s3 + $0x20] sm:$0xff] %v151
  %299 = vst [vmem:[%s3 + $0x28] sm:$0xff] %v261
  %300 = vst [vmem:[%s3 + $0x30] sm:$0xff] %v155
  %301 = vst [vmem:[%s3 + $0x38] sm:$0xff] %v157
  %302 = vst [vmem:[%s3 + $0x40] sm:$0xff] %v266
  %303 = vst [vmem:[%s3 + $0x48] sm:$0xff] %v161
  %304 = vst [vmem:[%s3 + $0x50] sm:$0xff] %v163
  %305 = vst [vmem:[%s3 + $0x58] sm:$0xff] %v271
  %306 = vst [vmem:[%s3 + $0x60] sm:$0xff] %v167
  %307 = vst [vmem:[%s3 + $0x68] sm:$0xff] %v169
  %308 = vst [vmem:[%s3 + $0x70] sm:$0xff] %v276
  %309 = vst [vmem:[%s3 + $0x78] sm:$0xff] %v173
  %310 = vst [vmem:[%s3 + $0x80] sm:$0xff] %v175
  %311 = vst [vmem:[%s3 + $0x88] sm:$0xff] %v281
  %312 = vst [vmem:[%s3 + $0x90] sm:$0xff] %v179
  %313 = vst [vmem:[%s3 + $0x98] sm:$0xff] %v181
  %314 = vst [vmem:[%s3 + $0xa0] sm:$0xff] %v286
  %315 = vst [vmem:[%s3 + $0xa8] sm:$0xff] %v185
  %316 = vst [vmem:[%s3 + $0xb0] sm:$0xff] %v187
  %317 = vst [vmem:[%s3 + $0xb8] sm:$0xff] %v291
  // Predicated region
  $region14: #{encoder_decoder_forward.6} parent=0 // pred_check
    _
  $region15: #{encoder_decoder_forward.6} parent=0 // pred_check_branch
    %319 = sbr.rel (0) target = $region17
  $region16: #{encoder_decoder_forward.6} parent=0 // pred_region
    _
  $region17: #{encoder_decoder_forward.6} parent=0 // pred_fallthru
    _
  // Predicated region
  $region18: #{encoder_decoder_forward.6} parent=0 // pred_check
    _
  $region19: #{encoder_decoder_forward.6} parent=0 // pred_check_branch
    %321 = sbr.rel (0) target = $region21
  $region20: #{encoder_decoder_forward.6} parent=0 // pred_region
    _
  $region21: #{encoder_decoder_forward.6} parent=0 // pred_fallthru
    _

// kernel: encoder_decoder_forward.7
$region0: #{encoder_decoder_forward.7}
  #allocation0 [shape = 'u32[]', space=smem, size = 0x4, offset = 0x4, fixed_abs, tag = 'smem constant byte address 0x4 - core index']
  #allocation1 [shape = 'u32[144,128]{1,0:T(1,128)}', space=vmem, size = 0x12000, scoped, tag = 'internal scratch']
  %s0 = inlined_call_operand.vmem [shape: f32[8,8,384], index: 0, kind: input, shape index: {}]
  %s1 = inlined_call_operand.vmem [shape: f32[128,384], index: 1, kind: input, shape index: {}]
  %s2 = inlined_call_operand.vmem [shape: f32[1,384], index: 2, kind: input, shape index: {}]
  %s3 = inlined_call_operand.vmem [shape: f32[8,8,128], index: 3, kind: output, shape index: {0}]
  %s4 = inlined_call_operand.vmem [shape: f32[8,128], index: 4, kind: output, shape index: {1}]
  %5 = xla_tuple %s3, %s4
  %s6 = sld [smem:[#allocation0]]
  $region37: #{encoder_decoder_forward.7} parent=0
    _
  %s8 = ssub.s32 1, %s6
  %s9 = scalar_select 0, %s8, %s6
  // Predicated region
  $region2: #{encoder_decoder_forward.7} parent=0 // pred_check
    _
  $region3: #{encoder_decoder_forward.7} parent=0 // pred_check_branch
    %11 = sbr.rel (0) target = $region5
  $region4: #{encoder_decoder_forward.7} parent=0 // pred_region
    _
  $region5: #{encoder_decoder_forward.7} parent=0 // pred_fallthru
    _
  // Predicated region
  $region6: #{encoder_decoder_forward.7} parent=0 // pred_check
    _
  $region7: #{encoder_decoder_forward.7} parent=0 // pred_check_branch
    %13 = sbr.rel (0) target = $region9
  $region8: #{encoder_decoder_forward.7} parent=0 // pred_region
    _
  $region9: #{encoder_decoder_forward.7} parent=0 // pred_fallthru
    _
  // Predicated region
  $region10: #{encoder_decoder_forward.7} parent=0 // pred_check
    _
  $region11: #{encoder_decoder_forward.7} parent=0 // pred_check_branch
    %15 = sbr.rel (0) target = $region13
  $region12: #{encoder_decoder_forward.7} parent=0 // pred_region
    _
  $region13: #{encoder_decoder_forward.7} parent=0 // pred_fallthru
    _
  %v16 = vld [vmem:[%s1] sm:$0xff]
  %v17 = vld [vmem:[%s1 + $0x8] sm:$0xff]
  %v18 = vld [vmem:[%s1 + $0x10] sm:$0xff]
  %v19 = vld [vmem:[%s1 + $0x18] sm:$0xff]
  %v20 = vld [vmem:[%s1 + $0x20] sm:$0xff]
  %v21 = vld [vmem:[%s1 + $0x28] sm:$0xff]
  %v22 = vld [vmem:[%s1 + $0x30] sm:$0xff]
  %v23 = vld [vmem:[%s1 + $0x38] sm:$0xff]
  %v24 = vld [vmem:[%s1 + $0x40] sm:$0xff]
  %v25 = vld [vmem:[%s1 + $0x48] sm:$0xff]
  %v26 = vld [vmem:[%s1 + $0x50] sm:$0xff]
  %v27 = vld [vmem:[%s1 + $0x58] sm:$0xff]
  %v28 = vld [vmem:[%s1 + $0x60] sm:$0xff]
  %v29 = vld [vmem:[%s1 + $0x68] sm:$0xff]
  %v30 = vld [vmem:[%s1 + $0x70] sm:$0xff]
  %v31 = vld [vmem:[%s1 + $0x78] sm:$0xff]
  %v32 = vld [vmem:[%s1 + $0x80] sm:$0xff]
  %v33 = vld [vmem:[%s1 + $0x88] sm:$0xff]
  %v34 = vld [vmem:[%s1 + $0x90] sm:$0xff]
  %v35 = vld [vmem:[%s1 + $0x98] sm:$0xff]
  %v36 = vld [vmem:[%s1 + $0xa0] sm:$0xff]
  %v37 = vld [vmem:[%s1 + $0xa8] sm:$0xff]
  %v38 = vld [vmem:[%s1 + $0xb0] sm:$0xff]
  %v39 = vld [vmem:[%s1 + $0xb8] sm:$0xff]
  %v40 = vld [vmem:[%s1 + $0xc0] sm:$0xff]
  %v41 = vld [vmem:[%s1 + $0xc8] sm:$0xff]
  %v42 = vld [vmem:[%s1 + $0xd0] sm:$0xff]
  %v43 = vld [vmem:[%s1 + $0xd8] sm:$0xff]
  %v44 = vld [vmem:[%s1 + $0xe0] sm:$0xff]
  %v45 = vld [vmem:[%s1 + $0xe8] sm:$0xff]
  %v46 = vld [vmem:[%s1 + $0xf0] sm:$0xff]
  %v47 = vld [vmem:[%s1 + $0xf8] sm:$0xff]
  %v48 = vld [vmem:[%s1 + $0x100] sm:$0xff]
  %v49 = vld [vmem:[%s1 + $0x108] sm:$0xff]
  %v50 = vld [vmem:[%s1 + $0x110] sm:$0xff]
  %v51 = vld [vmem:[%s1 + $0x118] sm:$0xff]
  %v52 = vld [vmem:[%s1 + $0x120] sm:$0xff]
  %v53 = vld [vmem:[%s1 + $0x128] sm:$0xff]
  %v54 = vld [vmem:[%s1 + $0x130] sm:$0xff]
  %v55 = vld [vmem:[%s1 + $0x138] sm:$0xff]
  %v56 = vld [vmem:[%s1 + $0x140] sm:$0xff]
  %v57 = vld [vmem:[%s1 + $0x148] sm:$0xff]
  %v58 = vld [vmem:[%s1 + $0x150] sm:$0xff]
  %v59 = vld [vmem:[%s1 + $0x158] sm:$0xff]
  %v60 = vld [vmem:[%s1 + $0x160] sm:$0xff]
  %v61 = vld [vmem:[%s1 + $0x168] sm:$0xff]
  %v62 = vld [vmem:[%s1 + $0x170] sm:$0xff]
  %v63 = vld [vmem:[%s1 + $0x178] sm:$0xff]
  %v64 = vld [vmem:[%s2] sm:$0x7]
  loop: start=0, step=1, limit=8
  $region14: #{encoder_decoder_forward.7} parent=0 // loop_pre_header
    _
  $region15: #{encoder_decoder_forward.7} parent=0 // loop_header
    %s66 = sphi 0, %s70
    %p67 = scmp.ge.s32.totalorder %s66, 8
    %v71 = vphi 0.0, %v255
  $region16: #{encoder_decoder_forward.7} parent=0 // loop_header_branch
    %69 = sbr.rel (%p67) target = $region20
  $region17: #{encoder_decoder_forward.7} parent=0 // loop_body
    %s72 = smul.u32 %s66, 3
    %s73 = smul.addr %s72, 8
    %s74 = scalar_lea.vmem %s0, %s73
    %v75 = vld [vmem:[%s74] sm:$0xff]
    %v76 = vld [vmem:[%s74 + $0x8] sm:$0xff]
    %v77 = vld [vmem:[%s74 + $0x10] sm:$0xff]
    %v79 = vlaneseq
    %v80 = vshrl.u32 %v79, 7
    %v81 = vsub.s32 0, %v80
    %v82 = vrot.slane %v64, %v81
    %v83 = vlaneseq
    %v84 = vshrl.u32 %v83, 7
    %v85 = vsub.s32 1, %v84
    %v86 = vrot.slane %v64, %v85
    %v87 = vlaneseq
    %v88 = vshrl.u32 %v87, 7
    %v89 = vsub.s32 2, %v88
    %v90 = vrot.slane %v64, %v89
    %94 = vmatprep.subr.mxu0 %v17
    %95 = vmatpush1.msra.mxu0 %v16
    %96 = vmatprep.subr.mxu0 %v20
    %97 = vmatpush1.msra.mxu0 %v19
    %98 = vmatprep.subr.mxu0 %v23
    %99 = vmatpush1.msra.mxu0 %v22
    %100 = vmatprep.subr.mxu0 %v26
    %101 = vmatpush1.msra.mxu0 %v25
    %102 = vmatprep.subr.mxu0 %v29
    %103 = vmatpush1.msra.mxu0 %v28
    %104 = vmatprep.subr.mxu0 %v32
    %105 = vmatpush1.msra.mxu0 %v31
    %106 = vmatprep.subr.mxu0 %v35
    %107 = vmatpush1.msra.mxu0 %v34
    %108 = vmatprep.subr.mxu0 %v38
    %109 = vmatpush1.msra.mxu0 %v37
    %110 = vmatprep.subr.mxu0 %v41
    %111 = vmatpush1.msra.mxu0 %v40
    %112 = vmatprep.subr.mxu0 %v44
    %113 = vmatpush1.msra.mxu0 %v43
    %114 = vmatprep.subr.mxu0 %v47
    %115 = vmatpush1.msra.mxu0 %v46
    %116 = vmatprep.subr.mxu0 %v50
    %117 = vmatpush1.msra.mxu0 %v49
    %118 = vmatprep.subr.mxu0 %v53
    %119 = vmatpush1.msra.mxu0 %v52
    %120 = vmatprep.subr.mxu0 %v56
    %121 = vmatpush1.msra.mxu0 %v55
    %122 = vmatprep.subr.mxu0 %v59
    %123 = vmatpush1.msra.mxu0 %v58
    %124 = vmatprep.subr.mxu0 %v62
    %125 = vmatpush1.msra.mxu0 %v61
    %126 = vmatprep.subr.mxu0 0.0
    %127 = vmatpush1.msra.mxu0 0.0
    %128 = vmatprep.subr.mxu0 0.0
    %129 = vmatpush1.msra.mxu0 0.0
    %130 = vmatprep.subr.mxu0 0.0
    %131 = vmatpush1.msra.mxu0 0.0
    %132 = vmatprep.subr.mxu0 0.0
    %133 = vmatpush1.msra.mxu0 0.0
    %134 = vmatprep.subr.mxu0 0.0
    %135 = vmatpush1.msra.mxu0 0.0
    %136 = vmatprep.subr.mxu0 0.0
    %137 = vmatpush1.msra.mxu0 0.0
    %138 = vmatprep.subr.mxu0 0.0
    %139 = vmatpush1.msra.mxu0 0.0
    %140 = vmatprep.subr.mxu0 0.0
    %141 = vmatpush1.msra.mxu0 0.0
    %142 = vmatprep.subr.mxu0 0.0
    %143 = vmatpush1.msra.mxu0 0.0
    %144 = vmatprep.subr.mxu0 0.0
    %145 = vmatpush1.msra.mxu0 0.0
    %146 = vmatprep.subr.mxu0 0.0
    %147 = vmatpush1.msra.mxu0 0.0
    %148 = vmatprep.subr.mxu0 0.0
    %149 = vmatpush1.msra.mxu0 0.0
    %150 = vmatprep.subr.mxu0 0.0
    %151 = vmatpush1.msra.mxu0 0.0
    %152 = vmatprep.subr.mxu0 0.0
    %153 = vmatpush1.msra.mxu0 0.0
    %154 = vmatprep.subr.mxu0 0.0
    %155 = vmatpush1.msra.mxu0 0.0
    %156 = vmatprep.subr.mxu0 0.0
    %157 = vmatpush1.msra.mxu0 0.0
    %158 = vmatprep.mubr.f32.mxu0 0.0
    %159 = vmatmul.mubr.f32.gmra.mrb[0].mxu0 %v71
    %v160 = vpop.f32.mrb[0].mxu0
    %v161 = vadd.f32 %v82, %v160
    %v162 = vpop.f32.mrb[0].mxu0
    %v163 = vadd.f32 %v86, %v162
    %164 = vdwg.mxu0
    %165 = vmatprep.subr.mxu0 0.0
    %166 = vmatpush1.msra.mxu0 %v18
    %167 = vmatprep.subr.mxu0 0.0
    %168 = vmatpush1.msra.mxu0 %v21
    %169 = vmatprep.subr.mxu0 0.0
    %170 = vmatpush1.msra.mxu0 %v24
    %171 = vmatprep.subr.mxu0 0.0
    %172 = vmatpush1.msra.mxu0 %v27
    %173 = vmatprep.subr.mxu0 0.0
    %174 = vmatpush1.msra.mxu0 %v30
    %175 = vmatprep.subr.mxu0 0.0
    %176 = vmatpush1.msra.mxu0 %v33
    %177 = vmatprep.subr.mxu0 0.0
    %178 = vmatpush1.msra.mxu0 %v36
    %179 = vmatprep.subr.mxu0 0.0
    %180 = vmatpush1.msra.mxu0 %v39
    %181 = vmatprep.subr.mxu0 0.0
    %182 = vmatpush1.msra.mxu0 %v42
    %183 = vmatprep.subr.mxu0 0.0
    %184 = vmatpush1.msra.mxu0 %v45
    %185 = vmatprep.subr.mxu0 0.0
    %186 = vmatpush1.msra.mxu0 %v48
    %187 = vmatprep.subr.mxu0 0.0
    %188 = vmatpush1.msra.mxu0 %v51
    %189 = vmatprep.subr.mxu0 0.0
    %190 = vmatpush1.msra.mxu0 %v54
    %191 = vmatprep.subr.mxu0 0.0
    %192 = vmatpush1.msra.mxu0 %v57
    %193 = vmatprep.subr.mxu0 0.0
    %194 = vmatpush1.msra.mxu0 %v60
    %195 = vmatprep.subr.mxu0 0.0
    %196 = vmatpush1.msra.mxu0 %v63
    %197 = vmatprep.subr.mxu0 0.0
    %198 = vmatpush1.msra.mxu0 0.0
    %199 = vmatprep.subr.mxu0 0.0
    %200 = vmatpush1.msra.mxu0 0.0
    %201 = vmatprep.subr.mxu0 0.0
    %202 = vmatpush1.msra.mxu0 0.0
    %203 = vmatprep.subr.mxu0 0.0
    %204 = vmatpush1.msra.mxu0 0.0
    %205 = vmatprep.subr.mxu0 0.0
    %206 = vmatpush1.msra.mxu0 0.0
    %207 = vmatprep.subr.mxu0 0.0
    %208 = vmatpush1.msra.mxu0 0.0
    %209 = vmatprep.subr.mxu0 0.0
    %210 = vmatpush1.msra.mxu0 0.0
    %211 = vmatprep.subr.mxu0 0.0
    %212 = vmatpush1.msra.mxu0 0.0
    %213 = vmatprep.subr.mxu0 0.0
    %214 = vmatpush1.msra.mxu0 0.0
    %215 = vmatprep.subr.mxu0 0.0
    %216 = vmatpush1.msra.mxu0 0.0
    %217 = vmatprep.subr.mxu0 0.0
    %218 = vmatpush1.msra.mxu0 0.0
    %219 = vmatprep.subr.mxu0 0.0
    %220 = vmatpush1.msra.mxu0 0.0
    %221 = vmatprep.subr.mxu0 0.0
    %222 = vmatpush1.msra.mxu0 0.0
    %223 = vmatprep.subr.mxu0 0.0
    %224 = vmatpush1.msra.mxu0 0.0
    %225 = vmatprep.subr.mxu0 0.0
    %226 = vmatpush1.msra.mxu0 0.0
    %227 = vmatprep.subr.mxu0 0.0
    %228 = vmatpush1.msra.mxu0 0.0
    %229 = vmatprep.mubr.f32.mxu0 0.0
    %230 = vmatmul.mubr.f32.gmra.mrb[0].mxu0 %v71
    %v231 = vpop.f32.mrb[0].mxu0
    %v232 = vadd.f32 %v90, %v231
    %v233 = vpop.f32.mrb[0].mxu0
    %234 = vdwg.mxu0
    %v235 = vadd.f32 %v75, %v161
    %v236 = vxor.u32 %v235, 2147483648
    %v237 = vmul.f32 %v236, 1.442695
    %v238 = vpow.pop %v237
    %v239 = vadd.f32 %v238, 1.0
    %v240 = vrcp.pop %v239
    %v241 = vmul.f32 1.0, %v240
    %v242 = vadd.f32 %v76, %v163
    %v243 = vxor.u32 %v242, 2147483648
    %v244 = vmul.f32 %v243, 1.442695
    %v245 = vpow.pop %v244
    %v246 = vadd.f32 %v245, 1.0
    %v247 = vrcp.pop %v246
    %v248 = vmul.f32 1.0, %v247
    %v249 = vmul.f32 %v241, %v232
    %v250 = vadd.f32 %v77, %v249
    %v251 = vtanh.pop %v250
    %v252 = vsub.f32 1.0, %v248
    %v253 = vmul.f32 %v252, %v251
    %v254 = vmul.f32 %v248, %v71
    %v255 = vadd.f32 %v253, %v254
    %s256 = smul.u32 %s66, 8
    %s257 = scalar_lea.vmem %s3, %s256
    %258 = vst [vmem:[%s257] sm:$0xff] %v255
  $region18: #{encoder_decoder_forward.7} parent=0 // loop_footer
    %s70 = sadd.s32 1, %s66
  $region19: #{encoder_decoder_forward.7} parent=0 // loop_footer_branch
    %65 = sbr.rel target = $region15
  $region20: #{encoder_decoder_forward.7} parent=0 // loop_exit
    _
  %259 = vst [vmem:[%s4] sm:$0xff] %v71
  // Predicated region
  $region21: #{encoder_decoder_forward.7} parent=0 // pred_check
    _
  $region22: #{encoder_decoder_forward.7} parent=0 // pred_check_branch
    %261 = sbr.rel (0) target = $region24
  $region23: #{encoder_decoder_forward.7} parent=0 // pred_region
    _
  $region24: #{encoder_decoder_forward.7} parent=0 // pred_fallthru
    _
  // Predicated region
  $region25: #{encoder_decoder_forward.7} parent=0 // pred_check
    _
  $region26: #{encoder_decoder_forward.7} parent=0 // pred_check_branch
    %263 = sbr.rel (0) target = $region28
  $region27: #{encoder_decoder_forward.7} parent=0 // pred_region
    _
  $region28: #{encoder_decoder_forward.7} parent=0 // pred_fallthru
    _
  // Predicated region
  $region29: #{encoder_decoder_forward.7} parent=0 // pred_check
    _
  $region30: #{encoder_decoder_forward.7} parent=0 // pred_check_branch
    %265 = sbr.rel (0) target = $region32
  $region31: #{encoder_decoder_forward.7} parent=0 // pred_region
    _
  $region32: #{encoder_decoder_forward.7} parent=0 // pred_fallthru
    _
  // Predicated region
  $region33: #{encoder_decoder_forward.7} parent=0 // pred_check
    _
  $region34: #{encoder_decoder_forward.7} parent=0 // pred_check_branch
    %267 = sbr.rel (0) target = $region36
  $region35: #{encoder_decoder_forward.7} parent=0 // pred_region
    _
  $region36: #{encoder_decoder_forward.7} parent=0 // pred_fallthru
    _

// kernel: encoder_decoder_forward.11
$region0: #{encoder_decoder_forward.11}
  #allocation0 [shape = 'u32[]', space=smem, size = 0x4, offset = 0x4, fixed_abs, tag = 'smem constant byte address 0x4 - core index']
  #allocation1 [shape = 'u32[144,128]{1,0:T(1,128)}', space=vmem, size = 0x12000, scoped, tag = 'internal scratch']
  %s0 = inlined_call_operand.vmem [shape: f32[64,128], index: 0, kind: input, shape index: {}]
  %s1 = inlined_call_operand.vmem [shape: f32[128,128], index: 1, kind: input, shape index: {}]
  %s2 = inlined_call_operand.vmem [shape: f32[1,128], index: 2, kind: input, shape index: {}]
  %s3 = inlined_call_operand.hbm [shape: f32[64,128], index: 3, kind: output, shape index: {}]
  %s4 = sld [smem:[#allocation0]]
  $region22: #{encoder_decoder_forward.11} parent=0
    _
  %s6 = ssub.s32 1, %s4
  %s7 = scalar_select 0, %s6, %s4
  $region1: #{encoder_decoder_forward.11} parent=0
    #allocation2 [shape = 'u8[32768]{0}', space=vmem, size = 0x8000, scoped, tag = 'output window, operand 0, single buffered']
    #allocation3 [shape = 's32[1]{0}', space=sflag, size = 0x4, scoped, tag = 'scoped memory for encoder_decoder_forward.11']
    %8 = vsyncpa [#allocation3], 0
    // Predicated region
    $region2: #{encoder_decoder_forward.11} parent=1 // pred_check
      _
    $region3: #{encoder_decoder_forward.11} parent=1 // pred_check_branch
      %10 = sbr.rel (0) target = $region5
    $region4: #{encoder_decoder_forward.11} parent=1 // pred_region
      _
    $region5: #{encoder_decoder_forward.11} parent=1 // pred_fallthru
      _
    // Predicated region
    $region6: #{encoder_decoder_forward.11} parent=1 // pred_check
      _
    $region7: #{encoder_decoder_forward.11} parent=1 // pred_check_branch
      %12 = sbr.rel (0) target = $region9
    $region8: #{encoder_decoder_forward.11} parent=1 // pred_region
      _
    $region9: #{encoder_decoder_forward.11} parent=1 // pred_fallthru
      _
    // Predicated region
    $region10: #{encoder_decoder_forward.11} parent=1 // pred_check
      _
    $region11: #{encoder_decoder_forward.11} parent=1 // pred_check_branch
      %14 = sbr.rel (0) target = $region13
    $region12: #{encoder_decoder_forward.11} parent=1 // pred_region
      _
    $region13: #{encoder_decoder_forward.11} parent=1 // pred_fallthru
      _
    %v15 = vld [vmem:[%s0] sm:$0xff]
    %v16 = vld [vmem:[%s0 + $0x8] sm:$0xff]
    %v17 = vld [vmem:[%s0 + $0x10] sm:$0xff]
    %v18 = vld [vmem:[%s0 + $0x18] sm:$0xff]
    %v19 = vld [vmem:[%s0 + $0x20] sm:$0xff]
    %v20 = vld [vmem:[%s0 + $0x28] sm:$0xff]
    %v21 = vld [vmem:[%s0 + $0x30] sm:$0xff]
    %v22 = vld [vmem:[%s0 + $0x38] sm:$0xff]
    %v23 = vld [vmem:[%s1] sm:$0xff]
    %v24 = vld [vmem:[%s1 + $0x8] sm:$0xff]
    %v25 = vld [vmem:[%s1 + $0x10] sm:$0xff]
    %v26 = vld [vmem:[%s1 + $0x18] sm:$0xff]
    %v27 = vld [vmem:[%s1 + $0x20] sm:$0xff]
    %v28 = vld [vmem:[%s1 + $0x28] sm:$0xff]
    %v29 = vld [vmem:[%s1 + $0x30] sm:$0xff]
    %v30 = vld [vmem:[%s1 + $0x38] sm:$0xff]
    %v31 = vld [vmem:[%s1 + $0x40] sm:$0xff]
    %v32 = vld [vmem:[%s1 + $0x48] sm:$0xff]
    %v33 = vld [vmem:[%s1 + $0x50] sm:$0xff]
    %v34 = vld [vmem:[%s1 + $0x58] sm:$0xff]
    %v35 = vld [vmem:[%s1 + $0x60] sm:$0xff]
    %v36 = vld [vmem:[%s1 + $0x68] sm:$0xff]
    %v37 = vld [vmem:[%s1 + $0x70] sm:$0xff]
    %v38 = vld [vmem:[%s1 + $0x78] sm:$0xff]
    %v39 = vld [vmem:[%s2] sm:$0x1]
    %v41 = vlaneseq
    %v42 = vshrl.u32 %v41, 7
    %v43 = vsub.s32 0, %v42
    %v44 = vrot.slane %v39, %v43
    %46 = vmatprep.subr.mxu0 0.0
    %47 = vmatpush1.msra.mxu0 %v23
    %48 = vmatprep.subr.mxu0 0.0
    %49 = vmatpush1.msra.mxu0 %v24
    %50 = vmatprep.subr.mxu0 0.0
    %51 = vmatpush1.msra.mxu0 %v25
    %52 = vmatprep.subr.mxu0 0.0
    %53 = vmatpush1.msra.mxu0 %v26
    %54 = vmatprep.subr.mxu0 0.0
    %55 = vmatpush1.msra.mxu0 %v27
    %56 = vmatprep.subr.mxu0 0.0
    %57 = vmatpush1.msra.mxu0 %v28
    %58 = vmatprep.subr.mxu0 0.0
    %59 = vmatpush1.msra.mxu0 %v29
    %60 = vmatprep.subr.mxu0 0.0
    %61 = vmatpush1.msra.mxu0 %v30
    %62 = vmatprep.subr.mxu0 0.0
    %63 = vmatpush1.msra.mxu0 %v31
    %64 = vmatprep.subr.mxu0 0.0
    %65 = vmatpush1.msra.mxu0 %v32
    %66 = vmatprep.subr.mxu0 0.0
    %67 = vmatpush1.msra.mxu0 %v33
    %68 = vmatprep.subr.mxu0 0.0
    %69 = vmatpush1.msra.mxu0 %v34
    %70 = vmatprep.subr.mxu0 0.0
    %71 = vmatpush1.msra.mxu0 %v35
    %72 = vmatprep.subr.mxu0 0.0
    %73 = vmatpush1.msra.mxu0 %v36
    %74 = vmatprep.subr.mxu0 0.0
    %75 = vmatpush1.msra.mxu0 %v37
    %76 = vmatprep.subr.mxu0 0.0
    %77 = vmatpush1.msra.mxu0 %v38
    %78 = vmatprep.subr.mxu0 0.0
    %79 = vmatpush1.msra.mxu0 0.0
    %80 = vmatprep.subr.mxu0 0.0
    %81 = vmatpush1.msra.mxu0 0.0
    %82 = vmatprep.subr.mxu0 0.0
    %83 = vmatpush1.msra.mxu0 0.0
    %84 = vmatprep.subr.mxu0 0.0
    %85 = vmatpush1.msra.mxu0 0.0
    %86 = vmatprep.subr.mxu0 0.0
    %87 = vmatpush1.msra.mxu0 0.0
    %88 = vmatprep.subr.mxu0 0.0
    %89 = vmatpush1.msra.mxu0 0.0
    %90 = vmatprep.subr.mxu0 0.0
    %91 = vmatpush1.msra.mxu0 0.0
    %92 = vmatprep.subr.mxu0 0.0
    %93 = vmatpush1.msra.mxu0 0.0
    %94 = vmatprep.subr.mxu0 0.0
    %95 = vmatpush1.msra.mxu0 0.0
    %96 = vmatprep.subr.mxu0 0.0
    %97 = vmatpush1.msra.mxu0 0.0
    %98 = vmatprep.subr.mxu0 0.0
    %99 = vmatpush1.msra.mxu0 0.0
    %100 = vmatprep.subr.mxu0 0.0
    %101 = vmatpush1.msra.mxu0 0.0
    %102 = vmatprep.subr.mxu0 0.0
    %103 = vmatpush1.msra.mxu0 0.0
    %104 = vmatprep.subr.mxu0 0.0
    %105 = vmatpush1.msra.mxu0 0.0
    %106 = vmatprep.subr.mxu0 0.0
    %107 = vmatpush1.msra.mxu0 0.0
    %108 = vmatprep.subr.mxu0 0.0
    %109 = vmatpush1.msra.mxu0 0.0
    %110 = vmatprep.mubr.f32.mxu0 0.0
    %111 = vmatmul.mubr.f32.gmra.mrb[0].mxu0 %v15
    %v112 = vpop.f32.mrb[0].mxu0
    %v113 = vadd.f32 %v44, %v112
    %v114 = vpop.f32.mrb[0].mxu0
    %115 = vmatprep.mubr.f32.mxu0 0.0
    %116 = vmatmul.mubr.f32.gmra.mrb[0].mxu0 %v16
    %v117 = vpop.f32.mrb[0].mxu0
    %v118 = vadd.f32 %v44, %v117
    %v119 = vpop.f32.mrb[0].mxu0
    %120 = vmatprep.mubr.f32.mxu0 0.0
    %121 = vmatmul.mubr.f32.gmra.mrb[0].mxu0 %v17
    %v122 = vpop.f32.mrb[0].mxu0
    %v123 = vadd.f32 %v44, %v122
    %v124 = vpop.f32.mrb[0].mxu0
    %125 = vmatprep.mubr.f32.mxu0 0.0
    %126 = vmatmul.mubr.f32.gmra.mrb[0].mxu0 %v18
    %v127 = vpop.f32.mrb[0].mxu0
    %v128 = vadd.f32 %v44, %v127
    %v129 = vpop.f32.mrb[0].mxu0
    %130 = vmatprep.mubr.f32.mxu0 0.0
    %131 = vmatmul.mubr.f32.gmra.mrb[0].mxu0 %v19
    %v132 = vpop.f32.mrb[0].mxu0
    %v133 = vadd.f32 %v44, %v132
    %v134 = vpop.f32.mrb[0].mxu0
    %135 = vmatprep.mubr.f32.mxu0 0.0
    %136 = vmatmul.mubr.f32.gmra.mrb[0].mxu0 %v20
    %v137 = vpop.f32.mrb[0].mxu0
    %v138 = vadd.f32 %v44, %v137
    %v139 = vpop.f32.mrb[0].mxu0
    %140 = vmatprep.mubr.f32.mxu0 0.0
    %141 = vmatmul.mubr.f32.gmra.mrb[0].mxu0 %v21
    %v142 = vpop.f32.mrb[0].mxu0
    %v143 = vadd.f32 %v44, %v142
    %v144 = vpop.f32.mrb[0].mxu0
    %145 = vmatprep.mubr.f32.mxu0 0.0
    %146 = vmatmul.mubr.f32.gmra.mrb[0].mxu0 %v22
    %v147 = vpop.f32.mrb[0].mxu0
    %v148 = vadd.f32 %v44, %v147
    %v149 = vpop.f32.mrb[0].mxu0
    %150 = vdwg.mxu0
    %151 = vst [vmem:[#allocation2] sm:$0xff] %v113
    %152 = vst [vmem:[#allocation2 + $0x8] sm:$0xff] %v118
    %153 = vst [vmem:[#allocation2 + $0x10] sm:$0xff] %v123
    %154 = vst [vmem:[#allocation2 + $0x18] sm:$0xff] %v128
    %155 = vst [vmem:[#allocation2 + $0x20] sm:$0xff] %v133
    %156 = vst [vmem:[#allocation2 + $0x28] sm:$0xff] %v138
    %157 = vst [vmem:[#allocation2 + $0x30] sm:$0xff] %v143
    %158 = vst [vmem:[#allocation2 + $0x38] sm:$0xff] %v148
    // Predicated region
    $region14: #{encoder_decoder_forward.11} parent=1 // pred_check
      _
    $region15: #{encoder_decoder_forward.11} parent=1 // pred_check_branch
      %160 = sbr.rel (0) target = $region17
    $region16: #{encoder_decoder_forward.11} parent=1 // pred_region
      %s162 = ssub.s32 1024, 1024
      %163 = vsyncadd [#allocation3], %s162
      %s164 = sshll.u32 [#allocation2], 4
      %s165 = int_to_ptr.vmem [resolvable:$true] %s164
      %170 = dma.vmem_to_hbm [thread:$0]  %s165, 1024, %s3, [#allocation3], 128, 128, 8
    $region17: #{encoder_decoder_forward.11} parent=1 // pred_fallthru
      _
    // Predicated region
    $region18: #{encoder_decoder_forward.11} parent=1 // pred_check
      _
    $region19: #{encoder_decoder_forward.11} parent=1 // pred_check_branch
      %172 = sbr.rel (0) target = $region21
    $region20: #{encoder_decoder_forward.11} parent=1 // pred_region
      %173 = dma.done [#allocation3], 1024
    $region21: #{encoder_decoder_forward.11} parent=1 // pred_fallthru
      _
    %174 = vsyncpa [#allocation3], 1

// kernel: encoder_decoder_forward.10
$region0: #{encoder_decoder_forward.10}
  #allocation0 [shape = 'u32[]', space=smem, size = 0x4, offset = 0x4, fixed_abs, tag = 'smem constant byte address 0x4 - core index']
  #allocation1 [shape = 'u32[144,128]{1,0:T(1,128)}', space=vmem, size = 0x12000, scoped, tag = 'internal scratch']
  %s0 = inlined_call_operand.vmem [shape: f32[8,8,384], index: 0, kind: input, shape index: {}]
  %s1 = inlined_call_operand.vmem [shape: f32[8,8,128], index: 1, kind: input, shape index: {}]
  %s2 = inlined_call_operand.vmem [shape: f32[8,8,128], index: 2, kind: input, shape index: {}]
  %s3 = inlined_call_operand.vmem [shape: f32[8,128], index: 3, kind: input, shape index: {}]
  %s4 = inlined_call_operand.vmem [shape: f32[128,128], index: 4, kind: input, shape index: {}]
  %s5 = inlined_call_operand.vmem [shape: f32[1,128], index: 5, kind: input, shape index: {}]
  %s6 = inlined_call_operand.vmem [shape: f32[128,384], index: 6, kind: input, shape index: {}]
  %s7 = inlined_call_operand.vmem [shape: f32[128,384], index: 7, kind: input, shape index: {}]
  %s8 = inlined_call_operand.vmem [shape: f32[1,384], index: 8, kind: input, shape index: {}]
  %s9 = inlined_call_operand.vmem [shape: f32[8,8,128], index: 9, kind: output, shape index: {0}]
  %s10 = inlined_call_operand.hbm [shape: f32[8,128], index: 10, kind: output, shape index: {1}]
  %11 = xla_tuple %s9, %s10
  %s12 = sld [smem:[#allocation0]]
  $region61: #{encoder_decoder_forward.10} parent=0
    _
  %s14 = ssub.s32 1, %s12
  %s15 = scalar_select 0, %s14, %s12
  $region1: #{encoder_decoder_forward.10} parent=0
    #allocation2 [shape = 'u8[4096]{0}', space=vmem, size = 0x1000, scoped, tag = 'output window, operand 1, single buffered']
    #allocation3 [shape = 's32[1]{0}', space=sflag, size = 0x4, scoped, tag = 'scoped memory for encoder_decoder_forward.10']
    %16 = vsyncpa [#allocation3], 0
    // Predicated region
    $region2: #{encoder_decoder_forward.10} parent=1 // pred_check
      _
    $region3: #{encoder_decoder_forward.10} parent=1 // pred_check_branch
      %18 = sbr.rel (0) target = $region5
    $region4: #{encoder_decoder_forward.10} parent=1 // pred_region
      _
    $region5: #{encoder_decoder_forward.10} parent=1 // pred_fallthru
      _
    // Predicated region
    $region6: #{encoder_decoder_forward.10} parent=1 // pred_check
      _
    $region7: #{encoder_decoder_forward.10} parent=1 // pred_check_branch
      %20 = sbr.rel (0) target = $region9
    $region8: #{encoder_decoder_forward.10} parent=1 // pred_region
      _
    $region9: #{encoder_decoder_forward.10} parent=1 // pred_fallthru
      _
    // Predicated region
    $region10: #{encoder_decoder_forward.10} parent=1 // pred_check
      _
    $region11: #{encoder_decoder_forward.10} parent=1 // pred_check_branch
      %22 = sbr.rel (0) target = $region13
    $region12: #{encoder_decoder_forward.10} parent=1 // pred_region
      _
    $region13: #{encoder_decoder_forward.10} parent=1 // pred_fallthru
      _
    // Predicated region
    $region14: #{encoder_decoder_forward.10} parent=1 // pred_check
      _
    $region15: #{encoder_decoder_forward.10} parent=1 // pred_check_branch
      %24 = sbr.rel (0) target = $region17
    $region16: #{encoder_decoder_forward.10} parent=1 // pred_region
      _
    $region17: #{encoder_decoder_forward.10} parent=1 // pred_fallthru
      _
    // Predicated region
    $region18: #{encoder_decoder_forward.10} parent=1 // pred_check
      _
    $region19: #{encoder_decoder_forward.10} parent=1 // pred_check_branch
      %26 = sbr.rel (0) target = $region21
    $region20: #{encoder_decoder_forward.10} parent=1 // pred_region
      _
    $region21: #{encoder_decoder_forward.10} parent=1 // pred_fallthru
      _
    // Predicated region
    $region22: #{encoder_decoder_forward.10} parent=1 // pred_check
      _
    $region23: #{encoder_decoder_forward.10} parent=1 // pred_check_branch
      %28 = sbr.rel (0) target = $region25
    $region24: #{encoder_decoder_forward.10} parent=1 // pred_region
      _
    $region25: #{encoder_decoder_forward.10} parent=1 // pred_fallthru
      _
    // Predicated region
    $region26: #{encoder_decoder_forward.10} parent=1 // pred_check
      _
    $region27: #{encoder_decoder_forward.10} parent=1 // pred_check_branch
      %30 = sbr.rel (0) target = $region29
    $region28: #{encoder_decoder_forward.10} parent=1 // pred_region
      _
    $region29: #{encoder_decoder_forward.10} parent=1 // pred_fallthru
      _
    // Predicated region
    $region30: #{encoder_decoder_forward.10} parent=1 // pred_check
      _
    $region31: #{encoder_decoder_forward.10} parent=1 // pred_check_branch
      %32 = sbr.rel (0) target = $region33
    $region32: #{encoder_decoder_forward.10} parent=1 // pred_region
      _
    $region33: #{encoder_decoder_forward.10} parent=1 // pred_fallthru
      _
    // Predicated region
    $region34: #{encoder_decoder_forward.10} parent=1 // pred_check
      _
    $region35: #{encoder_decoder_forward.10} parent=1 // pred_check_branch
      %34 = sbr.rel (0) target = $region37
    $region36: #{encoder_decoder_forward.10} parent=1 // pred_region
      _
    $region37: #{encoder_decoder_forward.10} parent=1 // pred_fallthru
      _
    %v35 = vld [vmem:[%s1] sm:$0xff]
    %v36 = vld [vmem:[%s1 + $0x8] sm:$0xff]
    %v37 = vld [vmem:[%s1 + $0x10] sm:$0xff]
    %v38 = vld [vmem:[%s1 + $0x18] sm:$0xff]
    %v39 = vld [vmem:[%s1 + $0x20] sm:$0xff]
    %v40 = vld [vmem:[%s1 + $0x28] sm:$0xff]
    %v41 = vld [vmem:[%s1 + $0x30] sm:$0xff]
    %v42 = vld [vmem:[%s1 + $0x38] sm:$0xff]
    %v43 = vld [vmem:[%s2] sm:$0xff]
    %v44 = vld [vmem:[%s2 + $0x8] sm:$0xff]
    %v45 = vld [vmem:[%s2 + $0x10] sm:$0xff]
    %v46 = vld [vmem:[%s2 + $0x18] sm:$0xff]
    %v47 = vld [vmem:[%s2 + $0x20] sm:$0xff]
    %v48 = vld [vmem:[%s2 + $0x28] sm:$0xff]
    %v49 = vld [vmem:[%s2 + $0x30] sm:$0xff]
    %v50 = vld [vmem:[%s2 + $0x38] sm:$0xff]
    %v51 = vld [vmem:[%s4] sm:$0xff]
    %v52 = vld [vmem:[%s4 + $0x8] sm:$0xff]
    %v53 = vld [vmem:[%s4 + $0x10] sm:$0xff]
    %v54 = vld [vmem:[%s4 + $0x18] sm:$0xff]
    %v55 = vld [vmem:[%s4 + $0x20] sm:$0xff]
    %v56 = vld [vmem:[%s4 + $0x28] sm:$0xff]
    %v57 = vld [vmem:[%s4 + $0x30] sm:$0xff]
    %v58 = vld [vmem:[%s4 + $0x38] sm:$0xff]
    %v59 = vld [vmem:[%s4 + $0x40] sm:$0xff]
    %v60 = vld [vmem:[%s4 + $0x48] sm:$0xff]
    %v61 = vld [vmem:[%s4 + $0x50] sm:$0xff]
    %v62 = vld [vmem:[%s4 + $0x58] sm:$0xff]
    %v63 = vld [vmem:[%s4 + $0x60] sm:$0xff]
    %v64 = vld [vmem:[%s4 + $0x68] sm:$0xff]
    %v65 = vld [vmem:[%s4 + $0x70] sm:$0xff]
    %v66 = vld [vmem:[%s4 + $0x78] sm:$0xff]
    %v67 = vld [vmem:[%s5] sm:$0x1]
    %v68 = vld [vmem:[%s6] sm:$0xff]
    %v69 = vld [vmem:[%s6 + $0x8] sm:$0xff]
    %v70 = vld [vmem:[%s6 + $0x10] sm:$0xff]
    %v71 = vld [vmem:[%s6 + $0x18] sm:$0xff]
    %v72 = vld [vmem:[%s6 + $0x20] sm:$0xff]
    %v73 = vld [vmem:[%s6 + $0x28] sm:$0xff]
    %v74 = vld [vmem:[%s6 + $0x30] sm:$0xff]
    %v75 = vld [vmem:[%s6 + $0x38] sm:$0xff]
    %v76 = vld [vmem:[%s6 + $0x40] sm:$0xff]
    %v77 = vld [vmem:[%s6 + $0x48] sm:$0xff]
    %v78 = vld [vmem:[%s6 + $0x50] sm:$0xff]
    %v79 = vld [vmem:[%s6 + $0x58] sm:$0xff]
    %v80 = vld [vmem:[%s6 + $0x60] sm:$0xff]
    %v81 = vld [vmem:[%s6 + $0x68] sm:$0xff]
    %v82 = vld [vmem:[%s6 + $0x70] sm:$0xff]
    %v83 = vld [vmem:[%s6 + $0x78] sm:$0xff]
    %v84 = vld [vmem:[%s6 + $0x80] sm:$0xff]
    %v85 = vld [vmem:[%s6 + $0x88] sm:$0xff]
    %v86 = vld [vmem:[%s6 + $0x90] sm:$0xff]
    %v87 = vld [vmem:[%s6 + $0x98] sm:$0xff]
    %v88 = vld [vmem:[%s6 + $0xa0] sm:$0xff]
    %v89 = vld [vmem:[%s6 + $0xa8] sm:$0xff]
    %v90 = vld [vmem:[%s6 + $0xb0] sm:$0xff]
    %v91 = vld [vmem:[%s6 + $0xb8] sm:$0xff]
    %v92 = vld [vmem:[%s6 + $0xc0] sm:$0xff]
    %v93 = vld [vmem:[%s6 + $0xc8] sm:$0xff]
    %v94 = vld [vmem:[%s6 + $0xd0] sm:$0xff]
    %v95 = vld [vmem:[%s6 + $0xd8] sm:$0xff]
    %v96 = vld [vmem:[%s6 + $0xe0] sm:$0xff]
    %v97 = vld [vmem:[%s6 + $0xe8] sm:$0xff]
    %v98 = vld [vmem:[%s6 + $0xf0] sm:$0xff]
    %v99 = vld [vmem:[%s6 + $0xf8] sm:$0xff]
    %v100 = vld [vmem:[%s6 + $0x100] sm:$0xff]
    %v101 = vld [vmem:[%s6 + $0x108] sm:$0xff]
    %v102 = vld [vmem:[%s6 + $0x110] sm:$0xff]
    %v103 = vld [vmem:[%s6 + $0x118] sm:$0xff]
    %v104 = vld [vmem:[%s6 + $0x120] sm:$0xff]
    %v105 = vld [vmem:[%s6 + $0x128] sm:$0xff]
    %v106 = vld [vmem:[%s6 + $0x130] sm:$0xff]
    %v107 = vld [vmem:[%s6 + $0x138] sm:$0xff]
    %v108 = vld [vmem:[%s6 + $0x140] sm:$0xff]
    %v109 = vld [vmem:[%s6 + $0x148] sm:$0xff]
    %v110 = vld [vmem:[%s6 + $0x150] sm:$0xff]
    %v111 = vld [vmem:[%s6 + $0x158] sm:$0xff]
    %v112 = vld [vmem:[%s6 + $0x160] sm:$0xff]
    %v113 = vld [vmem:[%s6 + $0x168] sm:$0xff]
    %v114 = vld [vmem:[%s6 + $0x170] sm:$0xff]
    %v115 = vld [vmem:[%s6 + $0x178] sm:$0xff]
    %v116 = vld [vmem:[%s7] sm:$0xff]
    %v117 = vld [vmem:[%s7 + $0x8] sm:$0xff]
    %v118 = vld [vmem:[%s7 + $0x10] sm:$0xff]
    %v119 = vld [vmem:[%s7 + $0x18] sm:$0xff]
    %v120 = vld [vmem:[%s7 + $0x20] sm:$0xff]
    %v121 = vld [vmem:[%s7 + $0x28] sm:$0xff]
    %v122 = vld [vmem:[%s7 + $0x30] sm:$0xff]
    %v123 = vld [vmem:[%s7 + $0x38] sm:$0xff]
    %v124 = vld [vmem:[%s7 + $0x40] sm:$0xff]
    %v125 = vld [vmem:[%s7 + $0x48] sm:$0xff]
    %v126 = vld [vmem:[%s7 + $0x50] sm:$0xff]
    %v127 = vld [vmem:[%s7 + $0x58] sm:$0xff]
    %v128 = vld [vmem:[%s7 + $0x60] sm:$0xff]
    %v129 = vld [vmem:[%s7 + $0x68] sm:$0xff]
    %v130 = vld [vmem:[%s7 + $0x70] sm:$0xff]
    %v131 = vld [vmem:[%s7 + $0x78] sm:$0xff]
    %v132 = vld [vmem:[%s7 + $0x80] sm:$0xff]
    %v133 = vld [vmem:[%s7 + $0x88] sm:$0xff]
    %v134 = vld [vmem:[%s7 + $0x90] sm:$0xff]
    %v135 = vld [vmem:[%s7 + $0x98] sm:$0xff]
    %v136 = vld [vmem:[%s7 + $0xa0] sm:$0xff]
    %v137 = vld [vmem:[%s7 + $0xa8] sm:$0xff]
    %v138 = vld [vmem:[%s7 + $0xb0] sm:$0xff]
    %v139 = vld [vmem:[%s7 + $0xb8] sm:$0xff]
    %v140 = vld [vmem:[%s7 + $0xc0] sm:$0xff]
    %v141 = vld [vmem:[%s7 + $0xc8] sm:$0xff]
    %v142 = vld [vmem:[%s7 + $0xd0] sm:$0xff]
    %v143 = vld [vmem:[%s7 + $0xd8] sm:$0xff]
    %v144 = vld [vmem:[%s7 + $0xe0] sm:$0xff]
    %v145 = vld [vmem:[%s7 + $0xe8] sm:$0xff]
    %v146 = vld [vmem:[%s7 + $0xf0] sm:$0xff]
    %v147 = vld [vmem:[%s7 + $0xf8] sm:$0xff]
    %v148 = vld [vmem:[%s7 + $0x100] sm:$0xff]
    %v149 = vld [vmem:[%s7 + $0x108] sm:$0xff]
    %v150 = vld [vmem:[%s7 + $0x110] sm:$0xff]
    %v151 = vld [vmem:[%s7 + $0x118] sm:$0xff]
    %v152 = vld [vmem:[%s7 + $0x120] sm:$0xff]
    %v153 = vld [vmem:[%s7 + $0x128] sm:$0xff]
    %v154 = vld [vmem:[%s7 + $0x130] sm:$0xff]
    %v155 = vld [vmem:[%s7 + $0x138] sm:$0xff]
    %v156 = vld [vmem:[%s7 + $0x140] sm:$0xff]
    %v157 = vld [vmem:[%s7 + $0x148] sm:$0xff]
    %v158 = vld [vmem:[%s7 + $0x150] sm:$0xff]
    %v159 = vld [vmem:[%s7 + $0x158] sm:$0xff]
    %v160 = vld [vmem:[%s7 + $0x160] sm:$0xff]
    %v161 = vld [vmem:[%s7 + $0x168] sm:$0xff]
    %v162 = vld [vmem:[%s7 + $0x170] sm:$0xff]
    %v163 = vld [vmem:[%s7 + $0x178] sm:$0xff]
    %v164 = vld [vmem:[%s8] sm:$0x7]
    %v165 = vld [vmem:[%s3] sm:$0xff]
    loop: start=0, step=1, limit=8
    $region38: #{encoder_decoder_forward.10} parent=1 // loop_pre_header
      _
    $region39: #{encoder_decoder_forward.10} parent=1 // loop_header
      %s167 = sphi 0, %s171
      %p168 = scmp.ge.s32.totalorder %s167, 8
      %v172 = vphi %v165, %v1069
    $region40: #{encoder_decoder_forward.10} parent=1 // loop_header_branch
      %170 = sbr.rel (%p168) target = $region44
    $region41: #{encoder_decoder_forward.10} parent=1 // loop_body
      %173 = vmatprep.subr.mxu0 0.0
      %174 = vmatpush1.msra.mxu0 %v51
      %175 = vmatprep.subr.mxu0 0.0
      %176 = vmatpush1.msra.mxu0 %v52
      %177 = vmatprep.subr.mxu0 0.0
      %178 = vmatpush1.msra.mxu0 %v53
      %179 = vmatprep.subr.mxu0 0.0
      %180 = vmatpush1.msra.mxu0 %v54
      %181 = vmatprep.subr.mxu0 0.0
      %182 = vmatpush1.msra.mxu0 %v55
      %183 = vmatprep.subr.mxu0 0.0
      %184 = vmatpush1.msra.mxu0 %v56
      %185 = vmatprep.subr.mxu0 0.0
      %186 = vmatpush1.msra.mxu0 %v57
      %187 = vmatprep.subr.mxu0 0.0
      %188 = vmatpush1.msra.mxu0 %v58
      %189 = vmatprep.subr.mxu0 0.0
      %190 = vmatpush1.msra.mxu0 %v59
      %191 = vmatprep.subr.mxu0 0.0
      %192 = vmatpush1.msra.mxu0 %v60
      %193 = vmatprep.subr.mxu0 0.0
      %194 = vmatpush1.msra.mxu0 %v61
      %195 = vmatprep.subr.mxu0 0.0
      %196 = vmatpush1.msra.mxu0 %v62
      %197 = vmatprep.subr.mxu0 0.0
      %198 = vmatpush1.msra.mxu0 %v63
      %199 = vmatprep.subr.mxu0 0.0
      %200 = vmatpush1.msra.mxu0 %v64
      %201 = vmatprep.subr.mxu0 0.0
      %202 = vmatpush1.msra.mxu0 %v65
      %203 = vmatprep.subr.mxu0 0.0
      %204 = vmatpush1.msra.mxu0 %v66
      %205 = vmatprep.subr.mxu0 0.0
      %206 = vmatpush1.msra.mxu0 0.0
      %207 = vmatprep.subr.mxu0 0.0
      %208 = vmatpush1.msra.mxu0 0.0
      %209 = vmatprep.subr.mxu0 0.0
      %210 = vmatpush1.msra.mxu0 0.0
      %211 = vmatprep.subr.mxu0 0.0
      %212 = vmatpush1.msra.mxu0 0.0
      %213 = vmatprep.subr.mxu0 0.0
      %214 = vmatpush1.msra.mxu0 0.0
      %215 = vmatprep.subr.mxu0 0.0
      %216 = vmatpush1.msra.mxu0 0.0
      %217 = vmatprep.subr.mxu0 0.0
      %218 = vmatpush1.msra.mxu0 0.0
      %219 = vmatprep.subr.mxu0 0.0
      %220 = vmatpush1.msra.mxu0 0.0
      %221 = vmatprep.subr.mxu0 0.0
      %222 = vmatpush1.msra.mxu0 0.0
      %223 = vmatprep.subr.mxu0 0.0
      %224 = vmatpush1.msra.mxu0 0.0
      %225 = vmatprep.subr.mxu0 0.0
      %226 = vmatpush1.msra.mxu0 0.0
      %227 = vmatprep.subr.mxu0 0.0
      %228 = vmatpush1.msra.mxu0 0.0
      %229 = vmatprep.subr.mxu0 0.0
      %230 = vmatpush1.msra.mxu0 0.0
      %231 = vmatprep.subr.mxu0 0.0
      %232 = vmatpush1.msra.mxu0 0.0
      %233 = vmatprep.subr.mxu0 0.0
      %234 = vmatpush1.msra.mxu0 0.0
      %235 = vmatprep.subr.mxu0 0.0
      %236 = vmatpush1.msra.mxu0 0.0
      %237 = vmatprep.mubr.f32.mxu0 0.0
      %238 = vmatmul.mubr.f32.gmra.mrb[0].mxu0 %v172
      %v239 = vpop.f32.mrb[0].mxu0
      %v240 = vadd.f32 0.0, %v239
      %v241 = vpop.f32.mrb[0].mxu0
      %242 = vdwg.mxu0
      %v244 = vcombine.high %v240, %v240
      %v246 = vunpack.c.l.s4 1966171168
      %v247 = vunpack.c.0.s8 %v246
      %v248 = vlaneseq
      %v249 = vshrl.u32 %v248, 7
      %v250 = vsub.s32 %v247, %v249
      %v251 = vrot.slane %v240, %v250
      %v253 = vunpack.c.l.s4 1966171168
      %v254 = vunpack.c.0.s8 %v253
      %v255 = vlaneseq
      %v256 = vshrl.u32 %v255, 7
      %v257 = vsub.s32 %v254, %v256
      %v258 = vrot.slane %v244, %v257
      %v259 = vcombine.high %v251, %v251
      %v260 = vcombine.high %v258, %v258
      %v262 = vunpack.c.l.s4 1966171168
      %v263 = vunpack.c.0.s8 %v262
      %v264 = vlaneseq
      %v265 = vshrl.u32 %v264, 7
      %v266 = vsub.s32 %v263, %v265
      %v267 = vrot.slane %v251, %v266
      %v269 = vunpack.c.l.s4 1966171168
      %v270 = vunpack.c.0.s8 %v269
      %v271 = vlaneseq
      %v272 = vshrl.u32 %v271, 7
      %v273 = vsub.s32 %v270, %v272
      %v274 = vrot.slane %v258, %v273
      %v276 = vunpack.c.l.s4 1966171168
      %v277 = vunpack.c.0.s8 %v276
      %v278 = vlaneseq
      %v279 = vshrl.u32 %v278, 7
      %v280 = vsub.s32 %v277, %v279
      %v281 = vrot.slane %v259, %v280
      %v283 = vunpack.c.l.s4 1966171168
      %v284 = vunpack.c.0.s8 %v283
      %v285 = vlaneseq
      %v286 = vshrl.u32 %v285, 7
      %v287 = vsub.s32 %v284, %v286
      %v288 = vrot.slane %v260, %v287
      %v289 = vcombine.high %v267, %v267
      %v290 = vcombine.high %v274, %v274
      %v291 = vcombine.high %v281, %v281
      %v292 = vcombine.high %v288, %v288
      %v293 = vlaneseq
      %v294 = vshrl.u32 %v293, 7
      %v295 = vsub.s32 0, %v294
      %v296 = vrot.slane %v267, %v295
      %v297 = vlaneseq
      %v298 = vshrl.u32 %v297, 7
      %v299 = vsub.s32 0, %v298
      %v300 = vrot.slane %v281, %v299
      %v301 = vlaneseq
      %v302 = vshrl.u32 %v301, 7
      %v303 = vsub.s32 0, %v302
      %v304 = vrot.slane %v289, %v303
      %v305 = vlaneseq
      %v306 = vshrl.u32 %v305, 7
      %v307 = vsub.s32 0, %v306
      %v308 = vrot.slane %v291, %v307
      %v309 = vlaneseq
      %v310 = vshrl.u32 %v309, 7
      %v311 = vsub.s32 0, %v310
      %v312 = vrot.slane %v274, %v311
      %v313 = vlaneseq
      %v314 = vshrl.u32 %v313, 7
      %v315 = vsub.s32 0, %v314
      %v316 = vrot.slane %v288, %v315
      %v317 = vlaneseq
      %v318 = vshrl.u32 %v317, 7
      %v319 = vsub.s32 0, %v318
      %v320 = vrot.slane %v290, %v319
      %v321 = vlaneseq
      %v322 = vshrl.u32 %v321, 7
      %v323 = vsub.s32 0, %v322
      %v324 = vrot.slane %v292, %v323
      %v333 = vadd.f32 %v296, %v43
      %v334 = vadd.f32 %v300, %v44
      %v335 = vadd.f32 %v304, %v45
      %v336 = vadd.f32 %v308, %v46
      %v337 = vadd.f32 %v312, %v47
      %v338 = vadd.f32 %v316, %v48
      %v339 = vadd.f32 %v320, %v49
      %v340 = vadd.f32 %v324, %v50
      %v341 = vtanh.pop %v333
      %v342 = vtanh.pop %v334
      %v343 = vtanh.pop %v335
      %v344 = vtanh.pop %v336
      %v345 = vtanh.pop %v337
      %v346 = vtanh.pop %v338
      %v347 = vtanh.pop %v339
      %v348 = vtanh.pop %v340
      %v350 = vlaneseq
      %v351 = vshrl.u32 %v350, 7
      %v352 = vsub.s32 0, %v351
      %v353 = vrot.slane %v67, %v352
      %v355 = vmul.f32 %v341, %v353
      %v356 = vmul.f32 %v342, %v353
      %v357 = vmul.f32 %v343, %v353
      %v358 = vmul.f32 %v344, %v353
      %v359 = vmul.f32 %v345, %v353
      %v360 = vmul.f32 %v346, %v353
      %v361 = vmul.f32 %v347, %v353
      %v362 = vmul.f32 %v348, %v353
      %363 = vadd.xlane.f32.xlu0 %v355
      %v364 = vpop.xlane.xlu0 %363
      %365 = vadd.xlane.f32.xlu0 %v356
      %v366 = vpop.xlane.xlu0 %365
      %367 = vadd.xlane.f32.xlu0 %v357
      %v368 = vpop.xlane.xlu0 %367
      %369 = vadd.xlane.f32.xlu0 %v358
      %v370 = vpop.xlane.xlu0 %369
      %371 = vadd.xlane.f32.xlu0 %v359
      %v372 = vpop.xlane.xlu0 %371
      %373 = vadd.xlane.f32.xlu0 %v360
      %v374 = vpop.xlane.xlu0 %373
      %375 = vadd.xlane.f32.xlu0 %v361
      %v376 = vpop.xlane.xlu0 %375
      %377 = vadd.xlane.f32.xlu0 %v362
      %v378 = vpop.xlane.xlu0 %377
      %v387 = vlaneseq
      %v388 = vand.u32 %v387, 127
      %v389 = vlaneseq
      %v390 = vshrl.u32 %v389, 7
      %v391 = vsub.s32 %v388, %v390
      %v392 = vrot.slane %v364, %v391
      %v393 = vlaneseq
      %v394 = vshrl.u32 %v393, 7
      %v395 = vsub.s32 %v388, %v394
      %v396 = vrot.slane %v366, %v395
      %v397 = vlaneseq
      %v398 = vshrl.u32 %v397, 7
      %v399 = vsub.s32 %v388, %v398
      %v400 = vrot.slane %v368, %v399
      %v401 = vlaneseq
      %v402 = vshrl.u32 %v401, 7
      %v403 = vsub.s32 %v388, %v402
      %v404 = vrot.slane %v370, %v403
      %v405 = vlaneseq
      %v406 = vshrl.u32 %v405, 7
      %v407 = vsub.s32 %v388, %v406
      %v408 = vrot.slane %v372, %v407
      %v409 = vlaneseq
      %v410 = vshrl.u32 %v409, 7
      %v411 = vsub.s32 %v388, %v410
      %v412 = vrot.slane %v374, %v411
      %v413 = vlaneseq
      %v414 = vshrl.u32 %v413, 7
      %v415 = vsub.s32 %v388, %v414
      %v416 = vrot.slane %v376, %v415
      %v417 = vlaneseq
      %v418 = vshrl.u32 %v417, 7
      %v419 = vsub.s32 %v388, %v418
      %v420 = vrot.slane %v378, %v419
      %vm421 = vcmask 1041409
      %v422 = vsel %vm421, %v396, %v392
      %vm423 = vcmask 1042434
      %v424 = vsel %vm423, %v400, %v422
      %vm425 = vcmask 1043459
      %v426 = vsel %vm425, %v404, %v424
      %vm427 = vcmask 1044484
      %v428 = vsel %vm427, %v408, %v426
      %vm429 = vcmask 1045509
      %v430 = vsel %vm429, %v412, %v428
      %vm431 = vcmask 1046534
      %v432 = vsel %vm431, %v416, %v430
      %vm433 = vcmask 1047559
      %v434 = vsel %vm433, %v420, %v432
      %vm436 = vcmask 64512
      %v437 = vsel %vm436, %v434, -inf
      %438 = vmax.xlane.f32.xlu0 %v437
      %v439 = vpop.xlane.xlu0 %438
      %v441 = vlaneseq
      %v442 = vshrl.u32 %v441, 7
      %v443 = vsub.s32 0, %v442
      %v444 = vrot.slane %v439, %v443
      %v445 = vlaneseq
      %v446 = vshrl.u32 %v445, 7
      %v447 = vsub.s32 1, %v446
      %v448 = vrot.slane %v439, %v447
      %v449 = vlaneseq
      %v450 = vshrl.u32 %v449, 7
      %v451 = vsub.s32 2, %v450
      %v452 = vrot.slane %v439, %v451
      %v453 = vlaneseq
      %v454 = vshrl.u32 %v453, 7
      %v455 = vsub.s32 3, %v454
      %v456 = vrot.slane %v439, %v455
      %v457 = vlaneseq
      %v458 = vshrl.u32 %v457, 7
      %v459 = vsub.s32 4, %v458
      %v460 = vrot.slane %v439, %v459
      %v461 = vlaneseq
      %v462 = vshrl.u32 %v461, 7
      %v463 = vsub.s32 5, %v462
      %v464 = vrot.slane %v439, %v463
      %v465 = vlaneseq
      %v466 = vshrl.u32 %v465, 7
      %v467 = vsub.s32 6, %v466
      %v468 = vrot.slane %v439, %v467
      %v469 = vlaneseq
      %v470 = vshrl.u32 %v469, 7
      %v471 = vsub.s32 7, %v470
      %v472 = vrot.slane %v439, %v471
      %v481 = vsub.f32 %v364, %v444
      %v482 = vsub.f32 %v366, %v448
      %v483 = vsub.f32 %v368, %v452
      %v484 = vsub.f32 %v370, %v456
      %v485 = vsub.f32 %v372, %v460
      %v486 = vsub.f32 %v374, %v464
      %v487 = vsub.f32 %v376, %v468
      %v488 = vsub.f32 %v378, %v472
      %v489 = vmul.f32 %v481, 1.442695
      %v490 = vpow.pop %v489
      %v491 = vmul.f32 %v482, 1.442695
      %v492 = vpow.pop %v491
      %v493 = vmul.f32 %v483, 1.442695
      %v494 = vpow.pop %v493
      %v495 = vmul.f32 %v484, 1.442695
      %v496 = vpow.pop %v495
      %v497 = vmul.f32 %v485, 1.442695
      %v498 = vpow.pop %v497
      %v499 = vmul.f32 %v486, 1.442695
      %v500 = vpow.pop %v499
      %v501 = vmul.f32 %v487, 1.442695
      %v502 = vpow.pop %v501
      %v503 = vmul.f32 %v488, 1.442695
      %v504 = vpow.pop %v503
      %513 = vset.pattern.permute.xlu0 0
      %514 = vperm.xlu0 %513, %v490
      %v515 = vpop.permute.xlu0 %514
      %516 = vset.pattern.permute.xlu0 0
      %517 = vperm.xlu0 %516, %v492
      %v518 = vpop.permute.xlu0 %517
      %519 = vset.pattern.permute.xlu0 0
      %520 = vperm.xlu0 %519, %v494
      %v521 = vpop.permute.xlu0 %520
      %522 = vset.pattern.permute.xlu0 0
      %523 = vperm.xlu0 %522, %v496
      %v524 = vpop.permute.xlu0 %523
      %525 = vset.pattern.permute.xlu0 0
      %526 = vperm.xlu0 %525, %v498
      %v527 = vpop.permute.xlu0 %526
      %528 = vset.pattern.permute.xlu0 0
      %529 = vperm.xlu0 %528, %v500
      %v530 = vpop.permute.xlu0 %529
      %531 = vset.pattern.permute.xlu0 0
      %532 = vperm.xlu0 %531, %v502
      %v533 = vpop.permute.xlu0 %532
      %534 = vset.pattern.permute.xlu0 0
      %535 = vperm.xlu0 %534, %v504
      %v536 = vpop.permute.xlu0 %535
      %v537 = vlaneseq
      %v538 = vshrl.u32 %v537, 7
      %v539 = vsub.s32 %v388, %v538
      %v540 = vrot.slane %v515, %v539
      %v541 = vlaneseq
      %v542 = vshrl.u32 %v541, 7
      %v543 = vsub.s32 %v388, %v542
      %v544 = vrot.slane %v518, %v543
      %v545 = vlaneseq
      %v546 = vshrl.u32 %v545, 7
      %v547 = vsub.s32 %v388, %v546
      %v548 = vrot.slane %v521, %v547
      %v549 = vlaneseq
      %v550 = vshrl.u32 %v549, 7
      %v551 = vsub.s32 %v388, %v550
      %v552 = vrot.slane %v524, %v551
      %v553 = vlaneseq
      %v554 = vshrl.u32 %v553, 7
      %v555 = vsub.s32 %v388, %v554
      %v556 = vrot.slane %v527, %v555
      %v557 = vlaneseq
      %v558 = vshrl.u32 %v557, 7
      %v559 = vsub.s32 %v388, %v558
      %v560 = vrot.slane %v530, %v559
      %v561 = vlaneseq
      %v562 = vshrl.u32 %v561, 7
      %v563 = vsub.s32 %v388, %v562
      %v564 = vrot.slane %v533, %v563
      %v565 = vlaneseq
      %v566 = vshrl.u32 %v565, 7
      %v567 = vsub.s32 %v388, %v566
      %v568 = vrot.slane %v536, %v567
      %v569 = vsel %vm421, %v544, %v540
      %v570 = vsel %vm423, %v548, %v569
      %v571 = vsel %vm425, %v552, %v570
      %v572 = vsel %vm427, %v556, %v571
      %v573 = vsel %vm429, %v560, %v572
      %v574 = vsel %vm431, %v564, %v573
      %v575 = vsel %vm433, %v568, %v574
      %v577 = vsel %vm436, %v575, 0.0
      %578 = vadd.xlane.f32.xlu0 %v577
      %v579 = vpop.xlane.xlu0 %578
      %v580 = vrcp.pop %v579
      %v582 = vlaneseq
      %v583 = vshrl.u32 %v582, 7
      %v584 = vsub.s32 0, %v583
      %v585 = vrot.slane %v580, %v584
      %v586 = vlaneseq
      %v587 = vshrl.u32 %v586, 7
      %v588 = vsub.s32 1, %v587
      %v589 = vrot.slane %v580, %v588
      %v590 = vlaneseq
      %v591 = vshrl.u32 %v590, 7
      %v592 = vsub.s32 2, %v591
      %v593 = vrot.slane %v580, %v592
      %v594 = vlaneseq
      %v595 = vshrl.u32 %v594, 7
      %v596 = vsub.s32 3, %v595
      %v597 = vrot.slane %v580, %v596
      %v598 = vlaneseq
      %v599 = vshrl.u32 %v598, 7
      %v600 = vsub.s32 4, %v599
      %v601 = vrot.slane %v580, %v600
      %v602 = vlaneseq
      %v603 = vshrl.u32 %v602, 7
      %v604 = vsub.s32 5, %v603
      %v605 = vrot.slane %v580, %v604
      %v606 = vlaneseq
      %v607 = vshrl.u32 %v606, 7
      %v608 = vsub.s32 6, %v607
      %v609 = vrot.slane %v580, %v608
      %v610 = vlaneseq
      %v611 = vshrl.u32 %v610, 7
      %v612 = vsub.s32 7, %v611
      %v613 = vrot.slane %v580, %v612
      %v622 = vmul.f32 %v490, %v585
      %v623 = vmul.f32 %v492, %v589
      %v624 = vmul.f32 %v494, %v593
      %v625 = vmul.f32 %v496, %v597
      %v626 = vmul.f32 %v498, %v601
      %v627 = vmul.f32 %v500, %v605
      %v628 = vmul.f32 %v502, %v609
      %v629 = vmul.f32 %v504, %v613
      %631 = vset.pattern.permute.xlu0 0
      %632 = vperm.xlu0 %631, %v622
      %v633 = vpop.permute.xlu0 %632
      %636 = vset.pattern.permute.xlu0 0
      %637 = vperm.xlu0 %636, %v623
      %v638 = vpop.permute.xlu0 %637
      %641 = vset.pattern.permute.xlu0 0
      %642 = vperm.xlu0 %641, %v624
      %v643 = vpop.permute.xlu0 %642
      %646 = vset.pattern.permute.xlu0 0
      %647 = vperm.xlu0 %646, %v625
      %v648 = vpop.permute.xlu0 %647
      %651 = vset.pattern.permute.xlu0 0
      %652 = vperm.xlu0 %651, %v626
      %v653 = vpop.permute.xlu0 %652
      %656 = vset.pattern.permute.xlu0 0
      %657 = vperm.xlu0 %656, %v627
      %v658 = vpop.permute.xlu0 %657
      %661 = vset.pattern.permute.xlu0 0
      %662 = vperm.xlu0 %661, %v628
      %v663 = vpop.permute.xlu0 %662
      %666 = vset.pattern.permute.xlu0 0
      %667 = vperm.xlu0 %666, %v629
      %v668 = vpop.permute.xlu0 %667
      %v670 = vmul.f32 %v633, %v35
      %v671 = vmul.f32 %v638, %v36
      %v672 = vmul.f32 %v643, %v37
      %v673 = vmul.f32 %v648, %v38
      %v674 = vmul.f32 %v653, %v39
      %v675 = vmul.f32 %v658, %v40
      %v676 = vmul.f32 %v663, %v41
      %v677 = vmul.f32 %v668, %v42
      %v678 = vrot.slane %v670, 4
      %v679 = vadd.f32 %v670, %v678
      %v680 = vrot.slane %v679, 2
      %v681 = vadd.f32 %v679, %v680
      %v682 = vrot.slane %v681, 1
      %v683 = vadd.f32 %v681, %v682
      %v684 = vrot.slane %v671, 4
      %v685 = vadd.f32 %v671, %v684
      %v686 = vrot.slane %v685, 2
      %v687 = vadd.f32 %v685, %v686
      %v688 = vrot.slane %v687, 1
      %v689 = vadd.f32 %v687, %v688
      %v690 = vrot.slane %v672, 4
      %v691 = vadd.f32 %v672, %v690
      %v692 = vrot.slane %v691, 2
      %v693 = vadd.f32 %v691, %v692
      %v694 = vrot.slane %v693, 1
      %v695 = vadd.f32 %v693, %v694
      %v696 = vrot.slane %v673, 4
      %v697 = vadd.f32 %v673, %v696
      %v698 = vrot.slane %v697, 2
      %v699 = vadd.f32 %v697, %v698
      %v700 = vrot.slane %v699, 1
      %v701 = vadd.f32 %v699, %v700
      %v702 = vrot.slane %v674, 4
      %v703 = vadd.f32 %v674, %v702
      %v704 = vrot.slane %v703, 2
      %v705 = vadd.f32 %v703, %v704
      %v706 = vrot.slane %v705, 1
      %v707 = vadd.f32 %v705, %v706
      %v708 = vrot.slane %v675, 4
      %v709 = vadd.f32 %v675, %v708
      %v710 = vrot.slane %v709, 2
      %v711 = vadd.f32 %v709, %v710
      %v712 = vrot.slane %v711, 1
      %v713 = vadd.f32 %v711, %v712
      %v714 = vrot.slane %v676, 4
      %v715 = vadd.f32 %v676, %v714
      %v716 = vrot.slane %v715, 2
      %v717 = vadd.f32 %v715, %v716
      %v718 = vrot.slane %v717, 1
      %v719 = vadd.f32 %v717, %v718
      %v720 = vrot.slane %v677, 4
      %v721 = vadd.f32 %v677, %v720
      %v722 = vrot.slane %v721, 2
      %v723 = vadd.f32 %v721, %v722
      %v724 = vrot.slane %v723, 1
      %v725 = vadd.f32 %v723, %v724
      %s726 = smul.u32 %s167, 3
      %s727 = smul.addr %s726, 8
      %s728 = scalar_lea.vmem %s0, %s727
      %v729 = vld [vmem:[%s728] sm:$0xff]
      %v730 = vld [vmem:[%s728 + $0x8] sm:$0xff]
      %v731 = vld [vmem:[%s728 + $0x10] sm:$0xff]
      %v740 = vsel %vm421, %v689, %v683
      %v741 = vsel %vm423, %v695, %v740
      %v742 = vsel %vm425, %v701, %v741
      %v743 = vsel %vm427, %v707, %v742
      %v744 = vsel %vm429, %v713, %v743
      %v745 = vsel %vm431, %v719, %v744
      %v746 = vsel %vm433, %v725, %v745
      %748 = vmatprep.subr.mxu0 %v69
      %749 = vmatpush1.msra.mxu0 %v68
      %750 = vmatprep.subr.mxu0 %v72
      %751 = vmatpush1.msra.mxu0 %v71
      %752 = vmatprep.subr.mxu0 %v75
      %753 = vmatpush1.msra.mxu0 %v74
      %754 = vmatprep.subr.mxu0 %v78
      %755 = vmatpush1.msra.mxu0 %v77
      %756 = vmatprep.subr.mxu0 %v81
      %757 = vmatpush1.msra.mxu0 %v80
      %758 = vmatprep.subr.mxu0 %v84
      %759 = vmatpush1.msra.mxu0 %v83
      %760 = vmatprep.subr.mxu0 %v87
      %761 = vmatpush1.msra.mxu0 %v86
      %762 = vmatprep.subr.mxu0 %v90
      %763 = vmatpush1.msra.mxu0 %v89
      %764 = vmatprep.subr.mxu0 %v93
      %765 = vmatpush1.msra.mxu0 %v92
      %766 = vmatprep.subr.mxu0 %v96
      %767 = vmatpush1.msra.mxu0 %v95
      %768 = vmatprep.subr.mxu0 %v99
      %769 = vmatpush1.msra.mxu0 %v98
      %770 = vmatprep.subr.mxu0 %v102
      %771 = vmatpush1.msra.mxu0 %v101
      %772 = vmatprep.subr.mxu0 %v105
      %773 = vmatpush1.msra.mxu0 %v104
      %774 = vmatprep.subr.mxu0 %v108
      %775 = vmatpush1.msra.mxu0 %v107
      %776 = vmatprep.subr.mxu0 %v111
      %777 = vmatpush1.msra.mxu0 %v110
      %778 = vmatprep.subr.mxu0 %v114
      %779 = vmatpush1.msra.mxu0 %v113
      %780 = vmatprep.subr.mxu0 0.0
      %781 = vmatpush1.msra.mxu0 0.0
      %782 = vmatprep.subr.mxu0 0.0
      %783 = vmatpush1.msra.mxu0 0.0
      %784 = vmatprep.subr.mxu0 0.0
      %785 = vmatpush1.msra.mxu0 0.0
      %786 = vmatprep.subr.mxu0 0.0
      %787 = vmatpush1.msra.mxu0 0.0
      %788 = vmatprep.subr.mxu0 0.0
      %789 = vmatpush1.msra.mxu0 0.0
      %790 = vmatprep.subr.mxu0 0.0
      %791 = vmatpush1.msra.mxu0 0.0
      %792 = vmatprep.subr.mxu0 0.0
      %793 = vmatpush1.msra.mxu0 0.0
      %794 = vmatprep.subr.mxu0 0.0
      %795 = vmatpush1.msra.mxu0 0.0
      %796 = vmatprep.subr.mxu0 0.0
      %797 = vmatpush1.msra.mxu0 0.0
      %798 = vmatprep.subr.mxu0 0.0
      %799 = vmatpush1.msra.mxu0 0.0
      %800 = vmatprep.subr.mxu0 0.0
      %801 = vmatpush1.msra.mxu0 0.0
      %802 = vmatprep.subr.mxu0 0.0
      %803 = vmatpush1.msra.mxu0 0.0
      %804 = vmatprep.subr.mxu0 0.0
      %805 = vmatpush1.msra.mxu0 0.0
      %806 = vmatprep.subr.mxu0 0.0
      %807 = vmatpush1.msra.mxu0 0.0
      %808 = vmatprep.subr.mxu0 0.0
      %809 = vmatpush1.msra.mxu0 0.0
      %810 = vmatprep.subr.mxu0 0.0
      %811 = vmatpush1.msra.mxu0 0.0
      %812 = vmatprep.mubr.f32.mxu0 0.0
      %813 = vmatmul.mubr.f32.gmra.mrb[0].mxu0 %v746
      %v814 = vpop.f32.mrb[0].mxu0
      %v815 = vadd.f32 0.0, %v814
      %v816 = vpop.f32.mrb[0].mxu0
      %v817 = vadd.f32 0.0, %v816
      %818 = vdwg.mxu0
      %819 = vmatprep.subr.mxu0 0.0
      %820 = vmatpush1.msra.mxu0 %v70
      %821 = vmatprep.subr.mxu0 0.0
      %822 = vmatpush1.msra.mxu0 %v73
      %823 = vmatprep.subr.mxu0 0.0
      %824 = vmatpush1.msra.mxu0 %v76
      %825 = vmatprep.subr.mxu0 0.0
      %826 = vmatpush1.msra.mxu0 %v79
      %827 = vmatprep.subr.mxu0 0.0
      %828 = vmatpush1.msra.mxu0 %v82
      %829 = vmatprep.subr.mxu0 0.0
      %830 = vmatpush1.msra.mxu0 %v85
      %831 = vmatprep.subr.mxu0 0.0
      %832 = vmatpush1.msra.mxu0 %v88
      %833 = vmatprep.subr.mxu0 0.0
      %834 = vmatpush1.msra.mxu0 %v91
      %835 = vmatprep.subr.mxu0 0.0
      %836 = vmatpush1.msra.mxu0 %v94
      %837 = vmatprep.subr.mxu0 0.0
      %838 = vmatpush1.msra.mxu0 %v97
      %839 = vmatprep.subr.mxu0 0.0
      %840 = vmatpush1.msra.mxu0 %v100
      %841 = vmatprep.subr.mxu0 0.0
      %842 = vmatpush1.msra.mxu0 %v103
      %843 = vmatprep.subr.mxu0 0.0
      %844 = vmatpush1.msra.mxu0 %v106
      %845 = vmatprep.subr.mxu0 0.0
      %846 = vmatpush1.msra.mxu0 %v109
      %847 = vmatprep.subr.mxu0 0.0
      %848 = vmatpush1.msra.mxu0 %v112
      %849 = vmatprep.subr.mxu0 0.0
      %850 = vmatpush1.msra.mxu0 %v115
      %851 = vmatprep.subr.mxu0 0.0
      %852 = vmatpush1.msra.mxu0 0.0
      %853 = vmatprep.subr.mxu0 0.0
      %854 = vmatpush1.msra.mxu0 0.0
      %855 = vmatprep.subr.mxu0 0.0
      %856 = vmatpush1.msra.mxu0 0.0
      %857 = vmatprep.subr.mxu0 0.0
      %858 = vmatpush1.msra.mxu0 0.0
      %859 = vmatprep.subr.mxu0 0.0
      %860 = vmatpush1.msra.mxu0 0.0
      %861 = vmatprep.subr.mxu0 0.0
      %862 = vmatpush1.msra.mxu0 0.0
      %863 = vmatprep.subr.mxu0 0.0
      %864 = vmatpush1.msra.mxu0 0.0
      %865 = vmatprep.subr.mxu0 0.0
      %866 = vmatpush1.msra.mxu0 0.0
      %867 = vmatprep.subr.mxu0 0.0
      %868 = vmatpush1.msra.mxu0 0.0
      %869 = vmatprep.subr.mxu0 0.0
      %870 = vmatpush1.msra.mxu0 0.0
      %871 = vmatprep.subr.mxu0 0.0
      %872 = vmatpush1.msra.mxu0 0.0
      %873 = vmatprep.subr.mxu0 0.0
      %874 = vmatpush1.msra.mxu0 0.0
      %875 = vmatprep.subr.mxu0 0.0
      %876 = vmatpush1.msra.mxu0 0.0
      %877 = vmatprep.subr.mxu0 0.0
      %878 = vmatpush1.msra.mxu0 0.0
      %879 = vmatprep.subr.mxu0 0.0
      %880 = vmatpush1.msra.mxu0 0.0
      %881 = vmatprep.subr.mxu0 0.0
      %882 = vmatpush1.msra.mxu0 0.0
      %883 = vmatprep.mubr.f32.mxu0 0.0
      %884 = vmatmul.mubr.f32.gmra.mrb[0].mxu0 %v746
      %v885 = vpop.f32.mrb[0].mxu0
      %v886 = vadd.f32 0.0, %v885
      %v887 = vpop.f32.mrb[0].mxu0
      %888 = vdwg.mxu0
      %v889 = vadd.f32 %v729, %v815
      %v890 = vadd.f32 %v730, %v817
      %v891 = vadd.f32 %v731, %v886
      %v893 = vlaneseq
      %v894 = vshrl.u32 %v893, 7
      %v895 = vsub.s32 0, %v894
      %v896 = vrot.slane %v164, %v895
      %v897 = vlaneseq
      %v898 = vshrl.u32 %v897, 7
      %v899 = vsub.s32 1, %v898
      %v900 = vrot.slane %v164, %v899
      %v901 = vlaneseq
      %v902 = vshrl.u32 %v901, 7
      %v903 = vsub.s32 2, %v902
      %v904 = vrot.slane %v164, %v903
      %908 = vmatprep.subr.mxu0 %v117
      %909 = vmatpush1.msra.mxu0 %v116
      %910 = vmatprep.subr.mxu0 %v120
      %911 = vmatpush1.msra.mxu0 %v119
      %912 = vmatprep.subr.mxu0 %v123
      %913 = vmatpush1.msra.mxu0 %v122
      %914 = vmatprep.subr.mxu0 %v126
      %915 = vmatpush1.msra.mxu0 %v125
      %916 = vmatprep.subr.mxu0 %v129
      %917 = vmatpush1.msra.mxu0 %v128
      %918 = vmatprep.subr.mxu0 %v132
      %919 = vmatpush1.msra.mxu0 %v131
      %920 = vmatprep.subr.mxu0 %v135
      %921 = vmatpush1.msra.mxu0 %v134
      %922 = vmatprep.subr.mxu0 %v138
      %923 = vmatpush1.msra.mxu0 %v137
      %924 = vmatprep.subr.mxu0 %v141
      %925 = vmatpush1.msra.mxu0 %v140
      %926 = vmatprep.subr.mxu0 %v144
      %927 = vmatpush1.msra.mxu0 %v143
      %928 = vmatprep.subr.mxu0 %v147
      %929 = vmatpush1.msra.mxu0 %v146
      %930 = vmatprep.subr.mxu0 %v150
      %931 = vmatpush1.msra.mxu0 %v149
      %932 = vmatprep.subr.mxu0 %v153
      %933 = vmatpush1.msra.mxu0 %v152
      %934 = vmatprep.subr.mxu0 %v156
      %935 = vmatpush1.msra.mxu0 %v155
      %936 = vmatprep.subr.mxu0 %v159
      %937 = vmatpush1.msra.mxu0 %v158
      %938 = vmatprep.subr.mxu0 %v162
      %939 = vmatpush1.msra.mxu0 %v161
      %940 = vmatprep.subr.mxu0 0.0
      %941 = vmatpush1.msra.mxu0 0.0
      %942 = vmatprep.subr.mxu0 0.0
      %943 = vmatpush1.msra.mxu0 0.0
      %944 = vmatprep.subr.mxu0 0.0
      %945 = vmatpush1.msra.mxu0 0.0
      %946 = vmatprep.subr.mxu0 0.0
      %947 = vmatpush1.msra.mxu0 0.0
      %948 = vmatprep.subr.mxu0 0.0
      %949 = vmatpush1.msra.mxu0 0.0
      %950 = vmatprep.subr.mxu0 0.0
      %951 = vmatpush1.msra.mxu0 0.0
      %952 = vmatprep.subr.mxu0 0.0
      %953 = vmatpush1.msra.mxu0 0.0
      %954 = vmatprep.subr.mxu0 0.0
      %955 = vmatpush1.msra.mxu0 0.0
      %956 = vmatprep.subr.mxu0 0.0
      %957 = vmatpush1.msra.mxu0 0.0
      %958 = vmatprep.subr.mxu0 0.0
      %959 = vmatpush1.msra.mxu0 0.0
      %960 = vmatprep.subr.mxu0 0.0
      %961 = vmatpush1.msra.mxu0 0.0
      %962 = vmatprep.subr.mxu0 0.0
      %963 = vmatpush1.msra.mxu0 0.0
      %964 = vmatprep.subr.mxu0 0.0
      %965 = vmatpush1.msra.mxu0 0.0
      %966 = vmatprep.subr.mxu0 0.0
      %967 = vmatpush1.msra.mxu0 0.0
      %968 = vmatprep.subr.mxu0 0.0
      %969 = vmatpush1.msra.mxu0 0.0
      %970 = vmatprep.subr.mxu0 0.0
      %971 = vmatpush1.msra.mxu0 0.0
      %972 = vmatprep.mubr.f32.mxu0 0.0
      %973 = vmatmul.mubr.f32.gmra.mrb[0].mxu0 %v172
      %v974 = vpop.f32.mrb[0].mxu0
      %v975 = vadd.f32 %v896, %v974
      %v976 = vpop.f32.mrb[0].mxu0
      %v977 = vadd.f32 %v900, %v976
      %978 = vdwg.mxu0
      %979 = vmatprep.subr.mxu0 0.0
      %980 = vmatpush1.msra.mxu0 %v118
      %981 = vmatprep.subr.mxu0 0.0
      %982 = vmatpush1.msra.mxu0 %v121
      %983 = vmatprep.subr.mxu0 0.0
      %984 = vmatpush1.msra.mxu0 %v124
      %985 = vmatprep.subr.mxu0 0.0
      %986 = vmatpush1.msra.mxu0 %v127
      %987 = vmatprep.subr.mxu0 0.0
      %988 = vmatpush1.msra.mxu0 %v130
      %989 = vmatprep.subr.mxu0 0.0
      %990 = vmatpush1.msra.mxu0 %v133
      %991 = vmatprep.subr.mxu0 0.0
      %992 = vmatpush1.msra.mxu0 %v136
      %993 = vmatprep.subr.mxu0 0.0
      %994 = vmatpush1.msra.mxu0 %v139
      %995 = vmatprep.subr.mxu0 0.0
      %996 = vmatpush1.msra.mxu0 %v142
      %997 = vmatprep.subr.mxu0 0.0
      %998 = vmatpush1.msra.mxu0 %v145
      %999 = vmatprep.subr.mxu0 0.0
      %1000 = vmatpush1.msra.mxu0 %v148
      %1001 = vmatprep.subr.mxu0 0.0
      %1002 = vmatpush1.msra.mxu0 %v151
      %1003 = vmatprep.subr.mxu0 0.0
      %1004 = vmatpush1.msra.mxu0 %v154
      %1005 = vmatprep.subr.mxu0 0.0
      %1006 = vmatpush1.msra.mxu0 %v157
      %1007 = vmatprep.subr.mxu0 0.0
      %1008 = vmatpush1.msra.mxu0 %v160
      %1009 = vmatprep.subr.mxu0 0.0
      %1010 = vmatpush1.msra.mxu0 %v163
      %1011 = vmatprep.subr.mxu0 0.0
      %1012 = vmatpush1.msra.mxu0 0.0
      %1013 = vmatprep.subr.mxu0 0.0
      %1014 = vmatpush1.msra.mxu0 0.0
      %1015 = vmatprep.subr.mxu0 0.0
      %1016 = vmatpush1.msra.mxu0 0.0
      %1017 = vmatprep.subr.mxu0 0.0
      %1018 = vmatpush1.msra.mxu0 0.0
      %1019 = vmatprep.subr.mxu0 0.0
      %1020 = vmatpush1.msra.mxu0 0.0
      %1021 = vmatprep.subr.mxu0 0.0
      %1022 = vmatpush1.msra.mxu0 0.0
      %1023 = vmatprep.subr.mxu0 0.0
      %1024 = vmatpush1.msra.mxu0 0.0
      %1025 = vmatprep.subr.mxu0 0.0
      %1026 = vmatpush1.msra.mxu0 0.0
      %1027 = vmatprep.subr.mxu0 0.0
      %1028 = vmatpush1.msra.mxu0 0.0
      %1029 = vmatprep.subr.mxu0 0.0
      %1030 = vmatpush1.msra.mxu0 0.0
      %1031 = vmatprep.subr.mxu0 0.0
      %1032 = vmatpush1.msra.mxu0 0.0
      %1033 = vmatprep.subr.mxu0 0.0
      %1034 = vmatpush1.msra.mxu0 0.0
      %1035 = vmatprep.subr.mxu0 0.0
      %1036 = vmatpush1.msra.mxu0 0.0
      %1037 = vmatprep.subr.mxu0 0.0
      %1038 = vmatpush1.msra.mxu0 0.0
      %1039 = vmatprep.subr.mxu0 0.0
      %1040 = vmatpush1.msra.mxu0 0.0
      %1041 = vmatprep.subr.mxu0 0.0
      %1042 = vmatpush1.msra.mxu0 0.0
      %1043 = vmatprep.mubr.f32.mxu0 0.0
      %1044 = vmatmul.mubr.f32.gmra.mrb[0].mxu0 %v172
      %v1045 = vpop.f32.mrb[0].mxu0
      %v1046 = vadd.f32 %v904, %v1045
      %v1047 = vpop.f32.mrb[0].mxu0
      %1048 = vdwg.mxu0
      %v1049 = vadd.f32 %v889, %v975
      %v1050 = vxor.u32 %v1049, 2147483648
      %v1051 = vmul.f32 %v1050, 1.442695
      %v1052 = vpow.pop %v1051
      %v1053 = vadd.f32 %v1052, 1.0
      %v1054 = vrcp.pop %v1053
      %v1055 = vmul.f32 1.0, %v1054
      %v1056 = vadd.f32 %v890, %v977
      %v1057 = vxor.u32 %v1056, 2147483648
      %v1058 = vmul.f32 %v1057, 1.442695
      %v1059 = vpow.pop %v1058
      %v1060 = vadd.f32 %v1059, 1.0
      %v1061 = vrcp.pop %v1060
      %v1062 = vmul.f32 1.0, %v1061
      %v1063 = vmul.f32 %v1055, %v1046
      %v1064 = vadd.f32 %v891, %v1063
      %v1065 = vtanh.pop %v1064
      %v1066 = vsub.f32 1.0, %v1062
      %v1067 = vmul.f32 %v1066, %v1065
      %v1068 = vmul.f32 %v1062, %v172
      %v1069 = vadd.f32 %v1067, %v1068
      %s1070 = smul.u32 %s167, 8
      %s1071 = scalar_lea.vmem %s9, %s1070
      %1072 = vst [vmem:[%s1071] sm:$0xff] %v1069
    $region42: #{encoder_decoder_forward.10} parent=1 // loop_footer
      %s171 = sadd.s32 1, %s167
    $region43: #{encoder_decoder_forward.10} parent=1 // loop_footer_branch
      %166 = sbr.rel target = $region39
    $region44: #{encoder_decoder_forward.10} parent=1 // loop_exit
      _
    %1073 = vst [vmem:[#allocation2] sm:$0xff] %v172
    // Predicated region
    $region45: #{encoder_decoder_forward.10} parent=1 // pred_check
      _
    $region46: #{encoder_decoder_forward.10} parent=1 // pred_check_branch
      %1075 = sbr.rel (0) target = $region48
    $region47: #{encoder_decoder_forward.10} parent=1 // pred_region
      _
    $region48: #{encoder_decoder_forward.10} parent=1 // pred_fallthru
      _
    // Predicated region
    $region49: #{encoder_decoder_forward.10} parent=1 // pred_check
      _
    $region50: #{encoder_decoder_forward.10} parent=1 // pred_check_branch
      %1077 = sbr.rel (0) target = $region52
    $region51: #{encoder_decoder_forward.10} parent=1 // pred_region
      %s1079 = ssub.s32 128, 128
      %1080 = vsyncadd [#allocation3], %s1079
      %s1082 = sshll.u32 [#allocation2], 4
      %s1083 = int_to_ptr.vmem [resolvable:$true] %s1082
      %1085 = dma.vmem_to_hbm [thread:$0]  %s1083, 128, %s10, [#allocation3]
    $region52: #{encoder_decoder_forward.10} parent=1 // pred_fallthru
      _
    // Predicated region
    $region53: #{encoder_decoder_forward.10} parent=1 // pred_check
      _
    $region54: #{encoder_decoder_forward.10} parent=1 // pred_check_branch
      %1087 = sbr.rel (0) target = $region56
    $region55: #{encoder_decoder_forward.10} parent=1 // pred_region
      _
    $region56: #{encoder_decoder_forward.10} parent=1 // pred_fallthru
      _
    // Predicated region
    $region57: #{encoder_decoder_forward.10} parent=1 // pred_check
      _
    $region58: #{encoder_decoder_forward.10} parent=1 // pred_check_branch
      %1089 = sbr.rel (0) target = $region60
    $region59: #{encoder_decoder_forward.10} parent=1 // pred_region
      %1090 = dma.done [#allocation3], 128
    $region60: #{encoder_decoder_forward.10} parent=1 // pred_fallthru
      _
    %1091 = vsyncpa [#allocation3], 1

</llo_original>
